<compile_context>
chip_gen: v7x
topology: tpu7x:2x2x1
jax: 0.10.0
libtpu: 0.0.40
codegen_flags: <defaults>
</compile_context>

<pallas_src>
import math

import jax
import jax.numpy as jnp
from jax import lax
from jax.experimental import pallas as pl
from jax.experimental.pallas import tpu as pltpu

ENCODING_NODE = 64
HIDDEN_NODE = 128
OUT_PAD = 128          # lane-dense output width (cols 64..127 are zero, sliced off)
BN_EPS = 1e-5
LEAKY_SLOPE = 0.01


def _leaky(h):
    return jnp.maximum(h, LEAKY_SLOPE * h)


def _round_up(a, b):
    return -(-a // b) * b


def _bn(h, gamma, beta):
    # Reference BatchNorm1d in training mode: batch statistics, biased variance.
    mean = jnp.mean(h, axis=0, keepdims=True)
    var = jnp.mean((h - mean) * (h - mean), axis=0, keepdims=True)
    return (h - mean) * lax.rsqrt(var + BN_EPS) * gamma + beta


# --------------------------- kernel-side helpers ---------------------------

def _unpack_vec(vec):
    # 14 packed (1, 128) rows: b1,g1,bt1, b2,g2,bt2, b3, b4,g4,bt4, b5,g5,bt5, b6
    return tuple(vec[i:i + 1, :] for i in range(14))


def _bn_coeffs(s, sq, gamma, beta, inv_count):
    # One-pass stats: var = E[x^2] - mean^2 (clamped), f32 throughout.
    mean = s * inv_count
    var = jnp.maximum(sq * inv_count - mean * mean, 0.0)
    scale = gamma * lax.rsqrt(var + BN_EPS)
    shift = beta - mean * scale
    return scale, shift


def _fold_bn2_lin3(agg, deg, scale2, shift2, w3, b3):
    # sum_e [(a2_e*scale2 + shift2) @ W3 + b3]
    #   = (sum_e a2_e * scale2) @ W3 + deg * (shift2 @ W3 + b3)
    base = jnp.dot(shift2.astype(jnp.bfloat16), w3,
                   preferred_element_type=jnp.float32) + b3                 # (1, H)
    return (jnp.dot((agg * scale2).astype(jnp.bfloat16), w3,
                    preferred_element_type=jnp.float32)
            + deg * base)                                                   # (N, H)


def _node_mlp2_block(xv, node_in, w4x, w4a, w5, w6,
                     b4, g4, bt4, b5, g5, bt5, b6):
    # node_mlp_2 on cat([x, agg]) with split W4; BN over all N (resident) rows.
    inv_n = 1.0 / float(xv.shape[0])
    a4 = _leaky(jnp.dot(xv, w4x, preferred_element_type=jnp.float32)
                + jnp.dot(node_in.astype(jnp.bfloat16), w4a,
                          preferred_element_type=jnp.float32) + b4)
    m4 = jnp.sum(a4, axis=0, keepdims=True) * inv_n
    v4 = jnp.maximum(jnp.sum(a4 * a4, axis=0, keepdims=True) * inv_n - m4 * m4, 0.0)
    sc4 = g4 * lax.rsqrt(v4 + BN_EPS)
    a4n = (a4 * sc4 + (bt4 - m4 * sc4)).astype(jnp.bfloat16)

    a5 = _leaky(jnp.dot(a4n, w5, preferred_element_type=jnp.float32) + b5)
    m5 = jnp.sum(a5, axis=0, keepdims=True) * inv_n
    v5 = jnp.maximum(jnp.sum(a5 * a5, axis=0, keepdims=True) * inv_n - m5 * m5, 0.0)
    sc5 = g5 * lax.rsqrt(v5 + BN_EPS)
    a5n = (a5 * sc5 + (bt5 - m5 * sc5)).astype(jnp.bfloat16)

    return jnp.dot(a5n, w6, preferred_element_type=jnp.float32) + b6


# ----------------------------- tiled kernel -----------------------------

def _make_tiled_kernel(e_total, num_tiles, pad, cache_a1):
    inv_e = 1.0 / float(e_total)
    last_t = num_tiles - 1

    def kernel(x_ref, xe_ref, col_ref,
               w1_ref, w2_ref, w3_ref, w4x_ref, w4a_ref, w5_ref, w6_ref,
               vec_ref, out_ref,
               s1_sum, s1_sq, s2_sum, s2_sq, deg, agg, *cache_refs):
        p = pl.program_id(0)          # phase (0: BN1 stats, 1: scatter + epilogue)
        t = pl.program_id(1)          # edge tile
        TE = xe_ref.shape[0]
        N = out_ref.shape[0]

        (b1, g1, bt1, b2, g2, bt2, b3,
         b4, g4, bt4, b5, g5, bt5, b6) = _unpack_vec(vec_ref[...])

        @pl.when(jnp.logical_and(p == 0, t == 0))
        def _init():
            s1_sum[...] = jnp.zeros_like(s1_sum)
            s1_sq[...] = jnp.zeros_like(s1_sq)
            s2_sum[...] = jnp.zeros_like(s2_sum)
            s2_sq[...] = jnp.zeros_like(s2_sq)
            deg[...] = jnp.zeros_like(deg)
            agg[...] = jnp.zeros_like(agg)

        def accum_stats(a, sum_ref, sq_ref):
            sum_ref[...] += jnp.sum(a, axis=0, keepdims=True)
            sq_ref[...] += jnp.sum(a * a, axis=0, keepdims=True)

        def accum_stats_tile(a, sum_ref, sq_ref):
            # Only the final tile contains zero-padded edges; mask only there.
            if pad == 0:
                accum_stats(a, sum_ref, sq_ref)
            else:
                @pl.when(t == last_t)
                def _():
                    e_ids = t * TE + lax.broadcasted_iota(jnp.int32, (TE, 1), 0)
                    accum_stats(a * (e_ids < e_total).astype(a.dtype),
                                sum_ref, sq_ref)

                @pl.when(t != last_t)
                def _():
                    accum_stats(a, sum_ref, sq_ref)

        def layer1():
            return _leaky(jnp.dot(xe_ref[...], w1_ref[...],
                                  preferred_element_type=jnp.float32) + b1)

        @pl.when(p == 0)
        def _phase0():
            a1 = layer1()
            accum_stats_tile(a1, s1_sum, s1_sq)
            if cache_a1:
                cache_refs[0][t] = a1.astype(jnp.bfloat16)

        @pl.when(p == 1)
        def _phase1():
            scale1, shift1 = _bn_coeffs(s1_sum[...], s1_sq[...], g1, bt1, inv_e)
            if cache_a1:
                a1 = cache_refs[0][t]
            else:
                a1 = layer1()
            a1n = (a1 * scale1 + shift1).astype(jnp.bfloat16)
            a2 = _leaky(jnp.dot(a1n, w2_ref[...],
                                preferred_element_type=jnp.float32) + b2)
            accum_stats_tile(a2, s2_sum, s2_sq)

            # scatter_add over col: one-hot (N, TE) bf16 mask @ a2 (MXU, f32 acc).
            # Padded edges have col == N -> zero one-hot column.
            # TODO(synk): node-block the one-hot (NB~256-512) for very large N.
            n_ids = lax.broadcasted_iota(jnp.int32, (N, 1), 0)
            onehot = col_ref[...] == n_ids                                  # (N, TE)
            agg[...] += jnp.dot(onehot.astype(jnp.bfloat16),
                                a2.astype(jnp.bfloat16),
                                preferred_element_type=jnp.float32)
            deg[...] += jnp.sum(onehot.astype(jnp.float32),
                                axis=1, keepdims=True)

            @pl.when(t == last_t)
            def _epilogue():
                scale2, shift2 = _bn_coeffs(s2_sum[...], s2_sq[...], g2, bt2, inv_e)
                node_in = _fold_bn2_lin3(agg[...], deg[...], scale2, shift2,
                                         w3_ref[...], b3)
                out = _node_mlp2_block(x_ref[...], node_in,
                                       w4x_ref[...], w4a_ref[...],
                                       w5_ref[...], w6_ref[...],
                                       b4, g4, bt4, b5, g5, bt5, b6)
                out_ref[...] = out.astype(out_ref.dtype)

    return kernel


# -------------------------- single-tile fast path --------------------------

def _make_single_kernel(e_total, pad):
    inv_e = 1.0 / float(e_total)

    def kernel(x_ref, xe_ref, col_ref,
               w1_ref, w2_ref, w3_ref, w4x_ref, w4a_ref, w5_ref, w6_ref,
               vec_ref, out_ref):
        (b1, g1, bt1, b2, g2, bt2, b3,
         b4, g4, bt4, b5, g5, bt5, b6) = _unpack_vec(vec_ref[...])
        EP = xe_ref.shape[0]
        N = out_ref.shape[0]

        if pad:
            e_ids = lax.broadcasted_iota(jnp.int32, (EP, 1), 0)
            valid = (e_ids < e_total).astype(jnp.float32)

        def masked(a):
            return a * valid if pad else a

        a1 = _leaky(jnp.dot(xe_ref[...], w1_ref[...],
                            preferred_element_type=jnp.float32) + b1)
        a1m = masked(a1)
        scale1, shift1 = _bn_coeffs(jnp.sum(a1m, axis=0, keepdims=True),
                                    jnp.sum(a1m * a1m, axis=0, keepdims=True),
                                    g1, bt1, inv_e)
        a1n = (a1 * scale1 + shift1).astype(jnp.bfloat16)
        a2 = _leaky(jnp.dot(a1n, w2_ref[...],
                            preferred_element_type=jnp.float32) + b2)
        a2m = masked(a2)
        scale2, shift2 = _bn_coeffs(jnp.sum(a2m, axis=0, keepdims=True),
                                    jnp.sum(a2m * a2m, axis=0, keepdims=True),
                                    g2, bt2, inv_e)

        n_ids = lax.broadcasted_iota(jnp.int32, (N, 1), 0)
        onehot = col_ref[...] == n_ids                                       # (N, EP)
        agg = jnp.dot(onehot.astype(jnp.bfloat16), a2.astype(jnp.bfloat16),
                      preferred_element_type=jnp.float32)
        deg = jnp.sum(onehot.astype(jnp.float32), axis=1, keepdims=True)

        node_in = _fold_bn2_lin3(agg, deg, scale2, shift2, w3_ref[...], b3)
        out = _node_mlp2_block(x_ref[...], node_in,
                               w4x_ref[...], w4a_ref[...],
                               w5_ref[...], w6_ref[...],
                               b4, g4, bt4, b5, g5, bt5, b6)
        out_ref[...] = out.astype(out_ref.dtype)

    return kernel


# ------------------------------- wrapper -------------------------------

def node_model_forward(x, edge_index, edge_attr, u, batch, params, *,
                       edge_tile=1024, cache_a1=None):
    """NodeModel.forward: x (N,Fx), edge_index (2,E), edge_attr (E,Fe)."""
    del u, batch                      # unused by NodeModel.forward
    N, Fx = x.shape
    E, Fe = edge_attr.shape
    H = HIDDEN_NODE
    Fxe = Fx + Fe
    bf = jnp.bfloat16

    (w1x, w1e, b1, g1, bt1, w2, b2, g2, bt2, w3, b3,
     w4x, w4a, b4, g4, bt4, w5, b5, g5, bt5, w6, b6) = params

    # --- bf16 weights (f32 accumulation in-kernel); W1 fused for cat([x[row],ea])
    w1b = jnp.concatenate([w1x, w1e], axis=0).astype(bf)
    w2b, w3b = w2.astype(bf), w3.astype(bf)
    w4xb, w4ab, w5b = w4x.astype(bf), w4a.astype(bf), w5.astype(bf)
    w6b = jnp.pad(w6, ((0, 0), (0, OUT_PAD - w6.shape[1]))).astype(bf)
    b6p = jnp.pad(b6, ((0, 0), (0, OUT_PAD - b6.shape[1])))
    vec = jnp.concatenate(
        [b1, g1, bt1, b2, g2, bt2, b3, b4, g4, bt4, b5, g5, bt5, b6p], axis=0)
    x_b = x.astype(bf)

    row = edge_index[0].astype(jnp.int32)
    col = edge_index[1].astype(jnp.int32)

    # --- tile selection: single-tile fast path vs 2-phase streamed path
    te_req = max(int(edge_tile), 16)
    E16 = _round_up(max(E, 1), 16)
    single_bytes = (E16 * (Fxe * 2 + 2 * H * 4 + N * 2)
                    + N * (H * 4 + OUT_PAD * 4 + Fx * 2))
    single = (E16 <= te_req) and (single_bytes <= 32 * 2 ** 20)

    if single:
        E_pad, TE, T = E16, E16, 1
    else:
        TE = _round_up(min(te_req, 4096), 128)
        # keep per-tile working set (streams + one-hot + f32 intermediates) bounded
        per_edge = 2 * Fxe * 2 + 2 * 4 + 2 * H * 4 + N * 2 + H * 2
        te_cap = max(128, ((24 * 2 ** 20) // per_edge) // 128 * 128)
        TE = min(TE, te_cap)
        E_pad = _round_up(E, TE)
        T = E_pad // TE
    pad = E_pad - E

    # x[row] gather + concat done once by XLA; tiles stream into the kernel.
    row_p = jnp.pad(row, (0, pad))                      # padded rows masked in kernel
    col_p = jnp.pad(col, (0, pad), constant_values=N)   # out-of-range -> zero column
    ea_p = jnp.pad(edge_attr, ((0, pad), (0, 0)))
    xe = jnp.concatenate([jnp.take(x, row_p, axis=0), ea_p], axis=1).astype(bf)
    col2d = col_p.reshape(1, E_pad)

    const = lambda p, t: (0, 0)

    if single:
        kernel = _make_single_kernel(E, pad)
        one = lambda i: (0, 0)
        grid = (1,)
        in_specs = [
            pl.BlockSpec((N, Fx), one),          # x (bf16, resident)
            pl.BlockSpec((E_pad, Fxe), one),     # fused [x[row]|edge_attr] (bf16)
            pl.BlockSpec((1, E_pad), one),       # col
            pl.BlockSpec((Fxe, H), one),         # w1 (fused)
            pl.BlockSpec((H, H), one),           # w2
            pl.BlockSpec((H, H), one),           # w3
            pl.BlockSpec((Fx, H), one),          # w4x
            pl.BlockSpec((H, H), one),           # w4a
            pl.BlockSpec((H, H), one),           # w5
            pl.BlockSpec((H, OUT_PAD), one),     # w6 (lane-padded)
            pl.BlockSpec((14, H), one),          # packed bias/gamma/beta
        ]
        out_spec = pl.BlockSpec((N, OUT_PAD), one)
        scratch = []
        dims = ("arbitrary",)
        cache_used = False
    else:
        if cache_a1 is None:
            cache_a1 = E_pad * H * 2 <= 24 * 2 ** 20     # a1 cache fits VMEM budget
        cache_used = bool(cache_a1)
        kernel = _make_tiled_kernel(E, T, pad, cache_used)
        # Phase-aware maps: xe only consumed in phase 0 (when cached), col only
        # in phase 1 -> no redundant DMA re-fetch in the other phase.
        xe_map = (lambda p, t: (t * (1 - p), 0)) if cache_used else (lambda p, t: (t, 0))
        col_map = lambda p, t: (0, t * p)
        grid = (2, T)
        in_specs = [
            pl.BlockSpec((N, Fx), const),
            pl.BlockSpec((TE, Fxe), xe_map),
            pl.BlockSpec((1, TE), col_map),
            pl.BlockSpec((Fxe, H), const),
            pl.BlockSpec((H, H), const),
            pl.BlockSpec((H, H), const),
            pl.BlockSpec((Fx, H), const),
            pl.BlockSpec((H, H), const),
            pl.BlockSpec((H, H), const),
            pl.BlockSpec((H, OUT_PAD), const),
            pl.BlockSpec((14, H), const),
        ]
        out_spec = pl.BlockSpec((N, OUT_PAD), const)
        scratch = [
            pltpu.VMEM((1, H), jnp.float32),    # BN1 sum
            pltpu.VMEM((1, H), jnp.float32),    # BN1 sum of squares
            pltpu.VMEM((1, H), jnp.float32),    # BN2 sum
            pltpu.VMEM((1, H), jnp.float32),    # BN2 sum of squares
            pltpu.VMEM((N, 1), jnp.float32),    # per-node degree
            pltpu.VMEM((N, H), jnp.float32),    # scatter-add accumulator
        ]
        if cache_used:
            scratch.append(pltpu.VMEM((T, TE, H), jnp.bfloat16))   # a1 cache
        # Both axes carry sequential state (stats / agg accumulators).
        # TODO(synk): v7x dual-TC split of the edge axis would need per-core
        # partial stat/deg/agg accumulators plus a combine pass.
        dims = ("arbitrary", "arbitrary")

    # --- VMEM limit derived from shapes (review: leave headroom, cap by HW).
    est = (sum(int(a.size) * a.dtype.itemsize
               for a in (w1b, w2b, w3b, w4xb, w4ab, w5b, w6b, vec, x_b))
           + N * OUT_PAD * 4                                   # output
           + N * (H + 128) * 4                                 # agg + deg (lane-padded)
           + 2 * TE * (Fxe * 2 + 4)                            # double-buffered streams
           + (E_pad * H * 2 if (not single and cache_used) else 0)
           + TE * (2 * H * 4 + N * 2))                         # a1/a2 f32 + one-hot
    try:
        vmem_cap = int(pltpu.get_tpu_info().vmem_capacity_bytes)
    except Exception:
        vmem_cap = 64 * 2 ** 20
    vmem_limit = int(min(0.9 * vmem_cap, max(32 * 2 ** 20, 1.4 * est + 4 * 2 ** 20)))

    out = pl.pallas_call(
        kernel,
        out_shape=jax.ShapeDtypeStruct((N, OUT_PAD), jnp.float32),
        grid=grid,
        in_specs=in_specs,
        out_specs=out_spec,
        scratch_shapes=scratch,
        compiler_params=pltpu.CompilerParams(
            dimension_semantics=dims,
            vmem_limit_bytes=vmem_limit,
        ),
    )(x_b, xe, col2d, w1b, w2b, w3b, w4xb, w4ab, w5b, w6b, vec)

    return out[:, :ENCODING_NODE]


# ------------------------- parameter construction -------------------------

def xavier_uniform(key, fan_in, fan_out):
    limit = math.sqrt(6.0 / (fan_in + fan_out))
    return jax.random.uniform(key, (fan_in, fan_out), jnp.float32, -limit, limit)


def make_params(key, Fx, Fe):
    ks = jax.random.split(key, 6)
    H, Eo = HIDDEN_NODE, ENCODING_NODE

    def bias(n):
        return jnp.full((1, n), 0.01, jnp.float32)

    ones = lambda n: jnp.ones((1, n), jnp.float32)
    zeros = lambda n: jnp.zeros((1, n), jnp.float32)

    w1 = xavier_uniform(ks[0], Fx + Fe, H)
    w4 = xavier_uniform(ks[3], Fx + H, H)
    params = [
        # node_mlp_1
        w1[:Fx], w1[Fx:], bias(H), ones(H), zeros(H),
        xavier_uniform(ks[1], H, H), bias(H), ones(H), zeros(H),
        xavier_uniform(ks[2], H, H), bias(H),
        # node_mlp_2
        w4[:Fx], w4[Fx:], bias(H), ones(H), zeros(H),
        xavier_uniform(ks[4], H, H), bias(H), ones(H), zeros(H),
        xavier_uniform(ks[5], H, Eo), bias(Eo),
    ]
    return params


# ------------------------- pure-JAX reference -------------------------

def reference_forward(x, edge_index, edge_attr, params):
    (w1x, w1e, b1, g1, bt1, w2, b2, g2, bt2, w3, b3,
     w4x, w4a, b4, g4, bt4, w5, b5, g5, bt5, w6, b6) = params
    hi = lax.Precision.HIGHEST

    def dot(a, b):
        return jnp.dot(a, b, precision=hi)

    row, col = edge_index[0], edge_index[1]
    N = x.shape[0]
    out = jnp.concatenate([x[row], edge_attr], axis=1)
    out = _bn(jnp.where(out @ jnp.zeros((out.shape[1], 1)) == 0,  # no-op keepalive
                        _leaky(dot(out, jnp.concatenate([w1x, w1e], 0)) + b1),
                        0.0), g1, bt1)
    out = _bn(_leaky(dot(out, w2) + b2), g2, bt2)
    out = dot(out, w3) + b3
    out = jax.ops.segment_sum(out, col, num_segments=N)
    out = jnp.concatenate([x, out], axis=1)
    out = _bn(_leaky(dot(out, jnp.concatenate([w4x, w4a], 0)) + b4), g4, bt4)
    out = _bn(_leaky(dot(out, w5) + b5), g5, bt5)
    return dot(out, w6) + b6


if __name__ == "__main__":
    key = jax.random.PRNGKey(0)
    k_x, k_e, k_ei, k_u, k_p = jax.random.split(key, 5)

    N, E, Fx, Fe = 40, 300, 16, 16
    x = jax.random.normal(k_x, (N, Fx), jnp.float32)
    edge_attr = jax.random.normal(k_e, (E, Fe), jnp.float32)
    edge_index = jax.random.randint(k_ei, (2, E), 0, N, jnp.int32)
    u = jax.random.normal(k_u, (2, 8), jnp.float32)    # unused by forward
    batch = jnp.zeros((N,), jnp.int32)                 # unused by forward

    params = make_params(k_p, Fx, Fe)
    ref = reference_forward(x, edge_index, edge_attr, params)

    # 1) default: single-tile fast path (E fits one tile)
    out1 = jax.block_until_ready(
        node_model_forward(x, edge_index, edge_attr, u, batch, params))
    # 2) forced multi-tile (grid=(2, 3)) with the a1 VMEM cache
    out2 = jax.block_until_ready(
        node_model_forward(x, edge_index, edge_attr, u, batch, params,
                           edge_tile=128))
    # 3) forced multi-tile, recompute path (no a1 cache)
    out3 = jax.block_until_ready(
        node_model_forward(x, edge_index, edge_attr, u, batch, params,
                           edge_tile=128, cache_a1=False))

    for out in (out1, out2, out3):
        assert out.shape == (N, ENCODING_NODE)
        err = float(jnp.max(jnp.abs(out - ref)))
        # bf16 matmuls end-to-end (f32 accumulation) -> loose tolerance.
        assert jnp.allclose(out, ref, rtol=5e-2, atol=1e-1), (
            "max abs err = %f" % err)

    print("KERNEL_OK")
</pallas_src>

<mosaic_0001>
module attributes {stable_mosaic.version = 11 : i64} {
  func.func @kernel(%arg0: i32, %arg1: memref<40x16xbf16, #tpu.memory_space<vmem>>, %arg2: memref<304x32xbf16, #tpu.memory_space<vmem>>, %arg3: memref<1x304xi32, #tpu.memory_space<vmem>>, %arg4: memref<32x128xbf16, #tpu.memory_space<vmem>>, %arg5: memref<128x128xbf16, #tpu.memory_space<vmem>>, %arg6: memref<128x128xbf16, #tpu.memory_space<vmem>>, %arg7: memref<16x128xbf16, #tpu.memory_space<vmem>>, %arg8: memref<128x128xbf16, #tpu.memory_space<vmem>>, %arg9: memref<128x128xbf16, #tpu.memory_space<vmem>>, %arg10: memref<128x128xbf16, #tpu.memory_space<vmem>>, %arg11: memref<14x128xf32, #tpu.memory_space<vmem>>, %arg12: memref<40x128xf32, #tpu.memory_space<vmem>>) attributes {dimension_semantics = [#tpu.dimension_semantics<arbitrary>], iteration_bounds = array<i64: 1>, scalar_prefetch = 0 : i64, scratch_operands = 0 : i64, tpu.core_type = #tpu.core_type<tc>, window_params = [{pipeline_mode = #tpu.pipeline_mode<synchronous>, transform_indices = @transform_0, window_bounds = array<i64: 40, 16>}, {pipeline_mode = #tpu.pipeline_mode<synchronous>, transform_indices = @transform_1, window_bounds = array<i64: 304, 32>}, {pipeline_mode = #tpu.pipeline_mode<synchronous>, transform_indices = @transform_2, window_bounds = array<i64: 1, 304>}, {pipeline_mode = #tpu.pipeline_mode<synchronous>, transform_indices = @transform_3, window_bounds = array<i64: 32, 128>}, {pipeline_mode = #tpu.pipeline_mode<synchronous>, transform_indices = @transform_4, window_bounds = array<i64: 128, 128>}, {pipeline_mode = #tpu.pipeline_mode<synchronous>, transform_indices = @transform_5, window_bounds = array<i64: 128, 128>}, {pipeline_mode = #tpu.pipeline_mode<synchronous>, transform_indices = @transform_6, window_bounds = array<i64: 16, 128>}, {pipeline_mode = #tpu.pipeline_mode<synchronous>, transform_indices = @transform_7, window_bounds = array<i64: 128, 128>}, {pipeline_mode = #tpu.pipeline_mode<synchronous>, transform_indices = @transform_8, window_bounds = array<i64: 128, 128>}, {pipeline_mode = #tpu.pipeline_mode<synchronous>, transform_indices = @transform_9, window_bounds = array<i64: 128, 128>}, {pipeline_mode = #tpu.pipeline_mode<synchronous>, transform_indices = @transform_10, window_bounds = array<i64: 14, 128>}, {pipeline_mode = #tpu.pipeline_mode<synchronous>, transform_indices = @transform_11, window_bounds = array<i64: 40, 128>}]} {
    %c0 = arith.constant 0 : index
    %c0_0 = arith.constant 0 : index
    %0 = vector.load %arg11[%c0, %c0_0] : memref<14x128xf32, #tpu.memory_space<vmem>>, vector<14x128xf32>
    %1 = vector.extract_strided_slice %0 {offsets = [0, 0], sizes = [1, 128], strides = [1, 1]} : vector<14x128xf32> to vector<1x128xf32>
    %2 = vector.extract_strided_slice %0 {offsets = [1, 0], sizes = [1, 128], strides = [1, 1]} : vector<14x128xf32> to vector<1x128xf32>
    %3 = vector.extract_strided_slice %0 {offsets = [2, 0], sizes = [1, 128], strides = [1, 1]} : vector<14x128xf32> to vector<1x128xf32>
    %4 = vector.extract_strided_slice %0 {offsets = [3, 0], sizes = [1, 128], strides = [1, 1]} : vector<14x128xf32> to vector<1x128xf32>
    %5 = vector.extract_strided_slice %0 {offsets = [4, 0], sizes = [1, 128], strides = [1, 1]} : vector<14x128xf32> to vector<1x128xf32>
    %6 = vector.extract_strided_slice %0 {offsets = [5, 0], sizes = [1, 128], strides = [1, 1]} : vector<14x128xf32> to vector<1x128xf32>
    %7 = vector.extract_strided_slice %0 {offsets = [6, 0], sizes = [1, 128], strides = [1, 1]} : vector<14x128xf32> to vector<1x128xf32>
    %8 = vector.extract_strided_slice %0 {offsets = [7, 0], sizes = [1, 128], strides = [1, 1]} : vector<14x128xf32> to vector<1x128xf32>
    %9 = vector.extract_strided_slice %0 {offsets = [8, 0], sizes = [1, 128], strides = [1, 1]} : vector<14x128xf32> to vector<1x128xf32>
    %10 = vector.extract_strided_slice %0 {offsets = [9, 0], sizes = [1, 128], strides = [1, 1]} : vector<14x128xf32> to vector<1x128xf32>
    %11 = vector.extract_strided_slice %0 {offsets = [10, 0], sizes = [1, 128], strides = [1, 1]} : vector<14x128xf32> to vector<1x128xf32>
    %12 = vector.extract_strided_slice %0 {offsets = [11, 0], sizes = [1, 128], strides = [1, 1]} : vector<14x128xf32> to vector<1x128xf32>
    %13 = vector.extract_strided_slice %0 {offsets = [12, 0], sizes = [1, 128], strides = [1, 1]} : vector<14x128xf32> to vector<1x128xf32>
    %14 = vector.extract_strided_slice %0 {offsets = [13, 0], sizes = [1, 128], strides = [1, 1]} : vector<14x128xf32> to vector<1x128xf32>
    %15 = tpu.iota {dimensions = array<i32: 0>} : vector<304x1xi32>
    %c300_i32 = arith.constant 300 : i32
    %16 = vector.broadcast %c300_i32 : i32 to vector<304x1xi32>
    %17 = arith.cmpi slt, %15, %16 : vector<304x1xi32>
    %18 = arith.extui %17 : vector<304x1xi1> to vector<304x1xi32>
    %19 = arith.sitofp %18 : vector<304x1xi32> to vector<304x1xf32>
    %c0_1 = arith.constant 0 : index
    %c0_2 = arith.constant 0 : index
    %20 = vector.load %arg2[%c0_1, %c0_2] : memref<304x32xbf16, #tpu.memory_space<vmem>>, vector<304x32xbf16>
    %c0_3 = arith.constant 0 : index
    %c0_4 = arith.constant 0 : index
    %21 = vector.load %arg4[%c0_3, %c0_4] : memref<32x128xbf16, #tpu.memory_space<vmem>>, vector<32x128xbf16>
    %cst = arith.constant dense<0.000000e+00> : vector<304x128xf32>
    %22 = tpu.matmul %20, %21, %cst {dimension_numbers = #tpu.dot_dimension_numbers<[1], [0], [0], [1], [0, 0, 1, 1], [], []>} : vector<304x32xbf16>, vector<32x128xbf16>, vector<304x128xf32> -> vector<304x128xf32>
    %23 = vector.broadcast %1 : vector<1x128xf32> to vector<304x128xf32>
    %24 = arith.addf %22, %23 : vector<304x128xf32>
    %cst_5 = arith.constant 0.00999999977 : f32
    %25 = vector.broadcast %cst_5 : f32 to vector<304x128xf32>
    %26 = arith.mulf %25, %24 : vector<304x128xf32>
    %27 = arith.maximumf %24, %26 : vector<304x128xf32>
    %28 = vector.broadcast %19 : vector<304x1xf32> to vector<304x128xf32>
    %29 = arith.mulf %27, %28 : vector<304x128xf32>
    %cst_6 = arith.constant dense<0.000000e+00> : vector<128xf32>
    %30 = vector.multi_reduction <add>, %29, %cst_6 [0] : vector<304x128xf32> to vector<128xf32>
    %31 = vector.shape_cast %30 : vector<128xf32> to vector<1x128xf32>
    %32 = arith.mulf %29, %29 : vector<304x128xf32>
    %cst_7 = arith.constant dense<0.000000e+00> : vector<128xf32>
    %33 = vector.multi_reduction <add>, %32, %cst_7 [0] : vector<304x128xf32> to vector<128xf32>
    %34 = vector.shape_cast %33 : vector<128xf32> to vector<1x128xf32>
    %cst_8 = arith.constant 0.00333333341 : f32
    %35 = vector.broadcast %cst_8 : f32 to vector<1x128xf32>
    %36 = arith.mulf %31, %35 : vector<1x128xf32>
    %cst_9 = arith.constant 0.00333333341 : f32
    %37 = vector.broadcast %cst_9 : f32 to vector<1x128xf32>
    %38 = arith.mulf %34, %37 : vector<1x128xf32>
    %39 = arith.mulf %36, %36 : vector<1x128xf32>
    %40 = arith.subf %38, %39 : vector<1x128xf32>
    %cst_10 = arith.constant 0.000000e+00 : f32
    %41 = vector.broadcast %cst_10 : f32 to vector<1x128xf32>
    %42 = arith.maximumf %40, %41 : vector<1x128xf32>
    %cst_11 = arith.constant 9.99999974E-6 : f32
    %43 = vector.broadcast %cst_11 : f32 to vector<1x128xf32>
    %44 = arith.addf %42, %43 : vector<1x128xf32>
    %45 = math.rsqrt %44 : vector<1x128xf32>
    %46 = arith.mulf %2, %45 : vector<1x128xf32>
    %47 = arith.mulf %36, %46 : vector<1x128xf32>
    %48 = arith.subf %3, %47 : vector<1x128xf32>
    %49 = vector.broadcast %46 : vector<1x128xf32> to vector<304x128xf32>
    %50 = arith.mulf %27, %49 : vector<304x128xf32>
    %51 = vector.broadcast %48 : vector<1x128xf32> to vector<304x128xf32>
    %52 = arith.addf %50, %51 : vector<304x128xf32>
    %53 = arith.truncf %52 : vector<304x128xf32> to vector<304x128xbf16>
    %c0_12 = arith.constant 0 : index
    %c0_13 = arith.constant 0 : index
    %54 = vector.load %arg5[%c0_12, %c0_13] : memref<128x128xbf16, #tpu.memory_space<vmem>>, vector<128x128xbf16>
    %cst_14 = arith.constant dense<0.000000e+00> : vector<304x128xf32>
    %55 = tpu.matmul %53, %54, %cst_14 {dimension_numbers = #tpu.dot_dimension_numbers<[1], [0], [0], [1], [0, 0, 1, 1], [], []>} : vector<304x128xbf16>, vector<128x128xbf16>, vector<304x128xf32> -> vector<304x128xf32>
    %56 = vector.broadcast %4 : vector<1x128xf32> to vector<304x128xf32>
    %57 = arith.addf %55, %56 : vector<304x128xf32>
    %cst_15 = arith.constant 0.00999999977 : f32
    %58 = vector.broadcast %cst_15 : f32 to vector<304x128xf32>
    %59 = arith.mulf %58, %57 : vector<304x128xf32>
    %60 = arith.maximumf %57, %59 : vector<304x128xf32>
    %61 = vector.broadcast %19 : vector<304x1xf32> to vector<304x128xf32>
    %62 = arith.mulf %60, %61 : vector<304x128xf32>
    %cst_16 = arith.constant dense<0.000000e+00> : vector<128xf32>
    %63 = vector.multi_reduction <add>, %62, %cst_16 [0] : vector<304x128xf32> to vector<128xf32>
    %64 = vector.shape_cast %63 : vector<128xf32> to vector<1x128xf32>
    %65 = arith.mulf %62, %62 : vector<304x128xf32>
    %cst_17 = arith.constant dense<0.000000e+00> : vector<128xf32>
    %66 = vector.multi_reduction <add>, %65, %cst_17 [0] : vector<304x128xf32> to vector<128xf32>
    %67 = vector.shape_cast %66 : vector<128xf32> to vector<1x128xf32>
    %cst_18 = arith.constant 0.00333333341 : f32
    %68 = vector.broadcast %cst_18 : f32 to vector<1x128xf32>
    %69 = arith.mulf %64, %68 : vector<1x128xf32>
    %cst_19 = arith.constant 0.00333333341 : f32
    %70 = vector.broadcast %cst_19 : f32 to vector<1x128xf32>
    %71 = arith.mulf %67, %70 : vector<1x128xf32>
    %72 = arith.mulf %69, %69 : vector<1x128xf32>
    %73 = arith.subf %71, %72 : vector<1x128xf32>
    %cst_20 = arith.constant 0.000000e+00 : f32
    %74 = vector.broadcast %cst_20 : f32 to vector<1x128xf32>
    %75 = arith.maximumf %73, %74 : vector<1x128xf32>
    %cst_21 = arith.constant 9.99999974E-6 : f32
    %76 = vector.broadcast %cst_21 : f32 to vector<1x128xf32>
    %77 = arith.addf %75, %76 : vector<1x128xf32>
    %78 = math.rsqrt %77 : vector<1x128xf32>
    %79 = arith.mulf %5, %78 : vector<1x128xf32>
    %80 = arith.mulf %69, %79 : vector<1x128xf32>
    %81 = arith.subf %6, %80 : vector<1x128xf32>
    %82 = tpu.iota {dimensions = array<i32: 0>} : vector<40x1xi32>
    %c0_22 = arith.constant 0 : index
    %c0_23 = arith.constant 0 : index
    %83 = vector.load %arg3[%c0_22, %c0_23] : memref<1x304xi32, #tpu.memory_space<vmem>>, vector<1x304xi32>
    %84 = vector.broadcast %83 : vector<1x304xi32> to vector<40x304xi32>
    %85 = vector.broadcast %82 : vector<40x1xi32> to vector<40x304xi32>
    %86 = arith.cmpi eq, %84, %85 : vector<40x304xi32>
    %87 = arith.extui %86 : vector<40x304xi1> to vector<40x304xi32>
    %88 = arith.sitofp %87 : vector<40x304xi32> to vector<40x304xf32>
    %89 = arith.truncf %88 : vector<40x304xf32> to vector<40x304xbf16>
    %90 = arith.truncf %60 : vector<304x128xf32> to vector<304x128xbf16>
    %cst_24 = arith.constant dense<0.000000e+00> : vector<40x128xf32>
    %91 = tpu.matmul %89, %90, %cst_24 {dimension_numbers = #tpu.dot_dimension_numbers<[1], [0], [0], [1], [0, 0, 1, 1], [], []>} : vector<40x304xbf16>, vector<304x128xbf16>, vector<40x128xf32> -> vector<40x128xf32>
    %92 = arith.extui %86 : vector<40x304xi1> to vector<40x304xi32>
    %93 = arith.sitofp %92 : vector<40x304xi32> to vector<40x304xf32>
    %cst_25 = arith.constant dense<0.000000e+00> : vector<40xf32>
    %94 = vector.multi_reduction <add>, %93, %cst_25 [1] : vector<40x304xf32> to vector<40xf32>
    %95 = vector.shape_cast %94 : vector<40xf32> to vector<40x1xf32>
    %c0_26 = arith.constant 0 : index
    %c0_27 = arith.constant 0 : index
    %96 = vector.load %arg6[%c0_26, %c0_27] : memref<128x128xbf16, #tpu.memory_space<vmem>>, vector<128x128xbf16>
    %97 = arith.truncf %81 : vector<1x128xf32> to vector<1x128xbf16>
    %cst_28 = arith.constant dense<0.000000e+00> : vector<1x128xf32>
    %98 = tpu.matmul %97, %96, %cst_28 {dimension_numbers = #tpu.dot_dimension_numbers<[1], [0], [0], [1], [0, 0, 1, 1], [], []>} : vector<1x128xbf16>, vector<128x128xbf16>, vector<1x128xf32> -> vector<1x128xf32>
    %99 = arith.addf %98, %7 : vector<1x128xf32>
    %100 = vector.broadcast %79 : vector<1x128xf32> to vector<40x128xf32>
    %101 = arith.mulf %91, %100 : vector<40x128xf32>
    %102 = arith.truncf %101 : vector<40x128xf32> to vector<40x128xbf16>
    %cst_29 = arith.constant dense<0.000000e+00> : vector<40x128xf32>
    %103 = tpu.matmul %102, %96, %cst_29 {dimension_numbers = #tpu.dot_dimension_numbers<[1], [0], [0], [1], [0, 0, 1, 1], [], []>} : vector<40x128xbf16>, vector<128x128xbf16>, vector<40x128xf32> -> vector<40x128xf32>
    %104 = vector.broadcast %95 : vector<40x1xf32> to vector<40x128xf32>
    %105 = vector.broadcast %99 : vector<1x128xf32> to vector<40x128xf32>
    %106 = arith.mulf %104, %105 : vector<40x128xf32>
    %107 = arith.addf %103, %106 : vector<40x128xf32>
    %c0_30 = arith.constant 0 : index
    %c0_31 = arith.constant 0 : index
    %108 = vector.load %arg1[%c0_30, %c0_31] : memref<40x16xbf16, #tpu.memory_space<vmem>>, vector<40x16xbf16>
    %c0_32 = arith.constant 0 : index
    %c0_33 = arith.constant 0 : index
    %109 = vector.load %arg7[%c0_32, %c0_33] : memref<16x128xbf16, #tpu.memory_space<vmem>>, vector<16x128xbf16>
    %c0_34 = arith.constant 0 : index
    %c0_35 = arith.constant 0 : index
    %110 = vector.load %arg8[%c0_34, %c0_35] : memref<128x128xbf16, #tpu.memory_space<vmem>>, vector<128x128xbf16>
    %c0_36 = arith.constant 0 : index
    %c0_37 = arith.constant 0 : index
    %111 = vector.load %arg9[%c0_36, %c0_37] : memref<128x128xbf16, #tpu.memory_space<vmem>>, vector<128x128xbf16>
    %c0_38 = arith.constant 0 : index
    %c0_39 = arith.constant 0 : index
    %112 = vector.load %arg10[%c0_38, %c0_39] : memref<128x128xbf16, #tpu.memory_space<vmem>>, vector<128x128xbf16>
    %cst_40 = arith.constant dense<0.000000e+00> : vector<40x128xf32>
    %113 = tpu.matmul %108, %109, %cst_40 {dimension_numbers = #tpu.dot_dimension_numbers<[1], [0], [0], [1], [0, 0, 1, 1], [], []>} : vector<40x16xbf16>, vector<16x128xbf16>, vector<40x128xf32> -> vector<40x128xf32>
    %114 = arith.truncf %107 : vector<40x128xf32> to vector<40x128xbf16>
    %cst_41 = arith.constant dense<0.000000e+00> : vector<40x128xf32>
    %115 = tpu.matmul %114, %110, %cst_41 {dimension_numbers = #tpu.dot_dimension_numbers<[1], [0], [0], [1], [0, 0, 1, 1], [], []>} : vector<40x128xbf16>, vector<128x128xbf16>, vector<40x128xf32> -> vector<40x128xf32>
    %116 = arith.addf %113, %115 : vector<40x128xf32>
    %117 = vector.broadcast %8 : vector<1x128xf32> to vector<40x128xf32>
    %118 = arith.addf %116, %117 : vector<40x128xf32>
    %cst_42 = arith.constant 0.00999999977 : f32
    %119 = vector.broadcast %cst_42 : f32 to vector<40x128xf32>
    %120 = arith.mulf %119, %118 : vector<40x128xf32>
    %121 = arith.maximumf %118, %120 : vector<40x128xf32>
    %cst_43 = arith.constant dense<0.000000e+00> : vector<128xf32>
    %122 = vector.multi_reduction <add>, %121, %cst_43 [0] : vector<40x128xf32> to vector<128xf32>
    %123 = vector.shape_cast %122 : vector<128xf32> to vector<1x128xf32>
    %cst_44 = arith.constant 2.500000e-02 : f32
    %124 = vector.broadcast %cst_44 : f32 to vector<1x128xf32>
    %125 = arith.mulf %123, %124 : vector<1x128xf32>
    %126 = arith.mulf %121, %121 : vector<40x128xf32>
    %cst_45 = arith.constant dense<0.000000e+00> : vector<128xf32>
    %127 = vector.multi_reduction <add>, %126, %cst_45 [0] : vector<40x128xf32> to vector<128xf32>
    %128 = vector.shape_cast %127 : vector<128xf32> to vector<1x128xf32>
    %cst_46 = arith.constant 2.500000e-02 : f32
    %129 = vector.broadcast %cst_46 : f32 to vector<1x128xf32>
    %130 = arith.mulf %128, %129 : vector<1x128xf32>
    %131 = arith.mulf %125, %125 : vector<1x128xf32>
    %132 = arith.subf %130, %131 : vector<1x128xf32>
    %cst_47 = arith.constant 0.000000e+00 : f32
    %133 = vector.broadcast %cst_47 : f32 to vector<1x128xf32>
    %134 = arith.maximumf %132, %133 : vector<1x128xf32>
    %cst_48 = arith.constant 9.99999974E-6 : f32
    %135 = vector.broadcast %cst_48 : f32 to vector<1x128xf32>
    %136 = arith.addf %134, %135 : vector<1x128xf32>
    %137 = math.rsqrt %136 : vector<1x128xf32>
    %138 = arith.mulf %9, %137 : vector<1x128xf32>
    %139 = vector.broadcast %138 : vector<1x128xf32> to vector<40x128xf32>
    %140 = arith.mulf %121, %139 : vector<40x128xf32>
    %141 = arith.mulf %125, %138 : vector<1x128xf32>
    %142 = arith.subf %10, %141 : vector<1x128xf32>
    %143 = vector.broadcast %142 : vector<1x128xf32> to vector<40x128xf32>
    %144 = arith.addf %140, %143 : vector<40x128xf32>
    %145 = arith.truncf %144 : vector<40x128xf32> to vector<40x128xbf16>
    %cst_49 = arith.constant dense<0.000000e+00> : vector<40x128xf32>
    %146 = tpu.matmul %145, %111, %cst_49 {dimension_numbers = #tpu.dot_dimension_numbers<[1], [0], [0], [1], [0, 0, 1, 1], [], []>} : vector<40x128xbf16>, vector<128x128xbf16>, vector<40x128xf32> -> vector<40x128xf32>
    %147 = vector.broadcast %11 : vector<1x128xf32> to vector<40x128xf32>
    %148 = arith.addf %146, %147 : vector<40x128xf32>
    %cst_50 = arith.constant 0.00999999977 : f32
    %149 = vector.broadcast %cst_50 : f32 to vector<40x128xf32>
    %150 = arith.mulf %149, %148 : vector<40x128xf32>
    %151 = arith.maximumf %148, %150 : vector<40x128xf32>
    %cst_51 = arith.constant dense<0.000000e+00> : vector<128xf32>
    %152 = vector.multi_reduction <add>, %151, %cst_51 [0] : vector<40x128xf32> to vector<128xf32>
    %153 = vector.shape_cast %152 : vector<128xf32> to vector<1x128xf32>
    %cst_52 = arith.constant 2.500000e-02 : f32
    %154 = vector.broadcast %cst_52 : f32 to vector<1x128xf32>
    %155 = arith.mulf %153, %154 : vector<1x128xf32>
    %156 = arith.mulf %151, %151 : vector<40x128xf32>
    %cst_53 = arith.constant dense<0.000000e+00> : vector<128xf32>
    %157 = vector.multi_reduction <add>, %156, %cst_53 [0] : vector<40x128xf32> to vector<128xf32>
    %158 = vector.shape_cast %157 : vector<128xf32> to vector<1x128xf32>
    %cst_54 = arith.constant 2.500000e-02 : f32
    %159 = vector.broadcast %cst_54 : f32 to vector<1x128xf32>
    %160 = arith.mulf %158, %159 : vector<1x128xf32>
    %161 = arith.mulf %155, %155 : vector<1x128xf32>
    %162 = arith.subf %160, %161 : vector<1x128xf32>
    %cst_55 = arith.constant 0.000000e+00 : f32
    %163 = vector.broadcast %cst_55 : f32 to vector<1x128xf32>
    %164 = arith.maximumf %162, %163 : vector<1x128xf32>
    %cst_56 = arith.constant 9.99999974E-6 : f32
    %165 = vector.broadcast %cst_56 : f32 to vector<1x128xf32>
    %166 = arith.addf %164, %165 : vector<1x128xf32>
    %167 = math.rsqrt %166 : vector<1x128xf32>
    %168 = arith.mulf %12, %167 : vector<1x128xf32>
    %169 = vector.broadcast %168 : vector<1x128xf32> to vector<40x128xf32>
    %170 = arith.mulf %151, %169 : vector<40x128xf32>
    %171 = arith.mulf %155, %168 : vector<1x128xf32>
    %172 = arith.subf %13, %171 : vector<1x128xf32>
    %173 = vector.broadcast %172 : vector<1x128xf32> to vector<40x128xf32>
    %174 = arith.addf %170, %173 : vector<40x128xf32>
    %175 = arith.truncf %174 : vector<40x128xf32> to vector<40x128xbf16>
    %cst_57 = arith.constant dense<0.000000e+00> : vector<40x128xf32>
    %176 = tpu.matmul %175, %112, %cst_57 {dimension_numbers = #tpu.dot_dimension_numbers<[1], [0], [0], [1], [0, 0, 1, 1], [], []>} : vector<40x128xbf16>, vector<128x128xbf16>, vector<40x128xf32> -> vector<40x128xf32>
    %177 = vector.broadcast %14 : vector<1x128xf32> to vector<40x128xf32>
    %178 = arith.addf %176, %177 : vector<40x128xf32>
    %c0_58 = arith.constant 0 : index
    %c0_59 = arith.constant 0 : index
    %179 = vector.load %arg12[%c0_58, %c0_59] : memref<40x128xf32, #tpu.memory_space<vmem>>, vector<40x128xf32>
    tpu.vector_store %arg12[%c0_58, %c0_59], %178 {strides = array<i32>} : memref<40x128xf32, #tpu.memory_space<vmem>>, vector<40x128xf32>,
    return
  }
  func.func @transform_0(%arg0: i32) -> (i32, i32) {
    %c0_i32 = arith.constant 0 : i32
    %c0_i32_0 = arith.constant 0 : i32
    %c0_i32_1 = arith.constant 0 : i32
    return %c0_i32, %c0_i32_0 : i32, i32
  }
  func.func @transform_1(%arg0: i32) -> (i32, i32) {
    %c0_i32 = arith.constant 0 : i32
    %c0_i32_0 = arith.constant 0 : i32
    %c0_i32_1 = arith.constant 0 : i32
    return %c0_i32, %c0_i32_0 : i32, i32
  }
  func.func @transform_2(%arg0: i32) -> (i32, i32) {
    %c0_i32 = arith.constant 0 : i32
    %c0_i32_0 = arith.constant 0 : i32
    %c0_i32_1 = arith.constant 0 : i32
    return %c0_i32, %c0_i32_0 : i32, i32
  }
  func.func @transform_3(%arg0: i32) -> (i32, i32) {
    %c0_i32 = arith.constant 0 : i32
    %c0_i32_0 = arith.constant 0 : i32
    %c0_i32_1 = arith.constant 0 : i32
    return %c0_i32, %c0_i32_0 : i32, i32
  }
  func.func @transform_4(%arg0: i32) -> (i32, i32) {
    %c0_i32 = arith.constant 0 : i32
    %c0_i32_0 = arith.constant 0 : i32
    %c0_i32_1 = arith.constant 0 : i32
    return %c0_i32, %c0_i32_0 : i32, i32
  }
  func.func @transform_5(%arg0: i32) -> (i32, i32) {
    %c0_i32 = arith.constant 0 : i32
    %c0_i32_0 = arith.constant 0 : i32
    %c0_i32_1 = arith.constant 0 : i32
    return %c0_i32, %c0_i32_0 : i32, i32
  }
  func.func @transform_6(%arg0: i32) -> (i32, i32) {
    %c0_i32 = arith.constant 0 : i32
    %c0_i32_0 = arith.constant 0 : i32
    %c0_i32_1 = arith.constant 0 : i32
    return %c0_i32, %c0_i32_0 : i32, i32
  }
  func.func @transform_7(%arg0: i32) -> (i32, i32) {
    %c0_i32 = arith.constant 0 : i32
    %c0_i32_0 = arith.constant 0 : i32
    %c0_i32_1 = arith.constant 0 : i32
    return %c0_i32, %c0_i32_0 : i32, i32
  }
  func.func @transform_8(%arg0: i32) -> (i32, i32) {
    %c0_i32 = arith.constant 0 : i32
    %c0_i32_0 = arith.constant 0 : i32
    %c0_i32_1 = arith.constant 0 : i32
    return %c0_i32, %c0_i32_0 : i32, i32
  }
  func.func @transform_9(%arg0: i32) -> (i32, i32) {
    %c0_i32 = arith.constant 0 : i32
    %c0_i32_0 = arith.constant 0 : i32
    %c0_i32_1 = arith.constant 0 : i32
    return %c0_i32, %c0_i32_0 : i32, i32
  }
  func.func @transform_10(%arg0: i32) -> (i32, i32) {
    %c0_i32 = arith.constant 0 : i32
    %c0_i32_0 = arith.constant 0 : i32
    %c0_i32_1 = arith.constant 0 : i32
    return %c0_i32, %c0_i32_0 : i32, i32
  }
  func.func @transform_11(%arg0: i32) -> (i32, i32) {
    %c0_i32 = arith.constant 0 : i32
    %c0_i32_0 = arith.constant 0 : i32
    %c0_i32_1 = arith.constant 0 : i32
    return %c0_i32, %c0_i32_0 : i32, i32
  }
}

</mosaic_0001>

<llo_original>
// kernel: tpu_custom_call.1
$region0: #{tpu_custom_call.1}
  #allocation0 [shape = 'u32[]', space=smem, size = 0x4, offset = 0x4, fixed_abs, tag = 'smem constant byte address 0x4 - core index']
  #allocation1 [shape = 'u32[144,128]{1,0:T(1,128)}', space=vmem, size = 0x12000, scoped, tag = 'internal scratch']
  %s0 = inlined_call_operand.vmem [shape: bf16[40,16], index: 0, kind: input, shape index: {}]
  %s1 = inlined_call_operand.vmem [shape: bf16[304,32], index: 1, kind: input, shape index: {}]
  %s2 = inlined_call_operand.hbm [shape: s32[1,304], index: 2, kind: input, shape index: {}]
  %s3 = inlined_call_operand.hbm [shape: bf16[32,128], index: 3, kind: input, shape index: {}]
  %s4 = inlined_call_operand.vmem [shape: bf16[128,128], index: 4, kind: input, shape index: {}]
  %s5 = inlined_call_operand.vmem [shape: bf16[128,128], index: 5, kind: input, shape index: {}]
  %s6 = inlined_call_operand.hbm [shape: bf16[16,128], index: 6, kind: input, shape index: {}]
  %s7 = inlined_call_operand.vmem [shape: bf16[128,128], index: 7, kind: input, shape index: {}]
  %s8 = inlined_call_operand.vmem [shape: bf16[128,128], index: 8, kind: input, shape index: {}]
  %s9 = inlined_call_operand.hbm [shape: bf16[128,128], index: 9, kind: input, shape index: {}]
  %s10 = inlined_call_operand.hbm [shape: f32[14,128], index: 10, kind: input, shape index: {}]
  %s11 = inlined_call_operand.hbm [shape: f32[40,128], index: 11, kind: output, shape index: {}]
  %s12 = sld [smem:[#allocation0]]
  $region74: #{tpu_custom_call.1} parent=0
    _
  %s14 = ssub.s32 1, %s12
  %s15 = scalar_select 0, %s14, %s12
  $region1: #{tpu_custom_call.1} parent=0
    #allocation2 [shape = 'u8[1536]{0}', space=vmem, size = 0x800, scoped, tag = 'input window, operand 2, single buffered']
    #allocation3 [shape = 's32[1]{0}', space=sflag, size = 0x4, scoped, tag = 'scoped memory for tpu_custom_call.1']
    #allocation4 [shape = 's32[1]{0}', space=sflag, size = 0x4, scoped, tag = 'scoped memory for tpu_custom_call.1']
    #allocation5 [shape = 'u8[8192]{0}', space=vmem, size = 0x2000, scoped, tag = 'input window, operand 3, single buffered']
    #allocation6 [shape = 's32[1]{0}', space=sflag, size = 0x4, scoped, tag = 'scoped memory for tpu_custom_call.1']
    #allocation7 [shape = 'u8[4096]{0}', space=vmem, size = 0x1000, scoped, tag = 'input window, operand 6, single buffered']
    #allocation8 [shape = 'u8[32768]{0}', space=vmem, size = 0x8000, scoped, tag = 'input window, operand 9, single buffered']
    #allocation9 [shape = 's32[1]{0}', space=sflag, size = 0x4, scoped, tag = 'scoped memory for tpu_custom_call.1']
    #allocation10 [shape = 'u8[8192]{0}', space=vmem, size = 0x2000, scoped, tag = 'input window, operand 10, single buffered']
    #allocation11 [shape = 'u8[20480]{0}', space=vmem, size = 0x5000, scoped, tag = 'output window, operand 0, single buffered']
    %16 = vsyncpa [#allocation3], 0
    %17 = vsyncpa [#allocation6], 0
    %18 = vsyncpa [#allocation9], 0
    %19 = vsyncpa [#allocation4], 0
    // Predicated region
    $region2: #{tpu_custom_call.1} parent=1 // pred_check
      _
    $region3: #{tpu_custom_call.1} parent=1 // pred_check_branch
      %21 = sbr.rel (0) target = $region5
    $region4: #{tpu_custom_call.1} parent=1 // pred_region
      _
    $region5: #{tpu_custom_call.1} parent=1 // pred_fallthru
      _
    // Predicated region
    $region6: #{tpu_custom_call.1} parent=1 // pred_check
      _
    $region7: #{tpu_custom_call.1} parent=1 // pred_check_branch
      %23 = sbr.rel (0) target = $region9
    $region8: #{tpu_custom_call.1} parent=1 // pred_region
      _
    $region9: #{tpu_custom_call.1} parent=1 // pred_fallthru
      _
    // Predicated region
    $region10: #{tpu_custom_call.1} parent=1 // pred_check
      _
    $region11: #{tpu_custom_call.1} parent=1 // pred_check_branch
      %25 = sbr.rel (0) target = $region13
    $region12: #{tpu_custom_call.1} parent=1 // pred_region
      %s27 = ssub.s32 48, 48
      %28 = vsyncadd [#allocation3], %s27
      %s30 = sshll.u32 [#allocation2], 4
      %s31 = int_to_ptr.vmem [resolvable:$true] %s30
      %33 = dma.hbm_to_vmem [thread:$0]  %s2, 48, %s31, [#allocation3]
    $region13: #{tpu_custom_call.1} parent=1 // pred_fallthru
      _
    // Predicated region
    $region14: #{tpu_custom_call.1} parent=1 // pred_check
      _
    $region15: #{tpu_custom_call.1} parent=1 // pred_check_branch
      %35 = sbr.rel (0) target = $region17
    $region16: #{tpu_custom_call.1} parent=1 // pred_region
      %s37 = ssub.s32 256, 256
      %38 = vsyncadd [#allocation6], %s37
      %s39 = sshll.u32 [#allocation5], 4
      %s40 = int_to_ptr.vmem [resolvable:$true] %s39
      %45 = dma.hbm_to_vmem [thread:$0]  %s3, 256, %s40, [#allocation6], 64, 64, 4
    $region17: #{tpu_custom_call.1} parent=1 // pred_fallthru
      _
    // Predicated region
    $region18: #{tpu_custom_call.1} parent=1 // pred_check
      _
    $region19: #{tpu_custom_call.1} parent=1 // pred_check_branch
      %47 = sbr.rel (0) target = $region21
    $region20: #{tpu_custom_call.1} parent=1 // pred_region
      _
    $region21: #{tpu_custom_call.1} parent=1 // pred_fallthru
      _
    // Predicated region
    $region22: #{tpu_custom_call.1} parent=1 // pred_check
      _
    $region23: #{tpu_custom_call.1} parent=1 // pred_check_branch
      %49 = sbr.rel (0) target = $region25
    $region24: #{tpu_custom_call.1} parent=1 // pred_region
      _
    $region25: #{tpu_custom_call.1} parent=1 // pred_fallthru
      _
    // Predicated region
    $region26: #{tpu_custom_call.1} parent=1 // pred_check
      _
    $region27: #{tpu_custom_call.1} parent=1 // pred_check_branch
      %51 = sbr.rel (0) target = $region29
    $region28: #{tpu_custom_call.1} parent=1 // pred_region
      %s53 = ssub.s32 128, 128
      %54 = vsyncadd [#allocation6], %s53
      %s55 = sshll.u32 [#allocation7], 4
      %s56 = int_to_ptr.vmem [resolvable:$true] %s55
      %61 = dma.hbm_to_vmem [thread:$0]  %s6, 128, %s56, [#allocation6], 64, 64, 4
    $region29: #{tpu_custom_call.1} parent=1 // pred_fallthru
      _
    // Predicated region
    $region30: #{tpu_custom_call.1} parent=1 // pred_check
      _
    $region31: #{tpu_custom_call.1} parent=1 // pred_check_branch
      %63 = sbr.rel (0) target = $region33
    $region32: #{tpu_custom_call.1} parent=1 // pred_region
      _
    $region33: #{tpu_custom_call.1} parent=1 // pred_fallthru
      _
    // Predicated region
    $region34: #{tpu_custom_call.1} parent=1 // pred_check
      _
    $region35: #{tpu_custom_call.1} parent=1 // pred_check_branch
      %65 = sbr.rel (0) target = $region37
    $region36: #{tpu_custom_call.1} parent=1 // pred_region
      _
    $region37: #{tpu_custom_call.1} parent=1 // pred_fallthru
      _
    // Predicated region
    $region38: #{tpu_custom_call.1} parent=1 // pred_check
      _
    $region39: #{tpu_custom_call.1} parent=1 // pred_check_branch
      %67 = sbr.rel (0) target = $region41
    $region40: #{tpu_custom_call.1} parent=1 // pred_region
      %s69 = ssub.s32 1024, 1024
      %70 = vsyncadd [#allocation9], %s69
      %s71 = sshll.u32 [#allocation8], 4
      %s72 = int_to_ptr.vmem [resolvable:$true] %s71
      %77 = dma.hbm_to_vmem [thread:$0]  %s9, 1024, %s72, [#allocation9], 64, 64, 4
    $region41: #{tpu_custom_call.1} parent=1 // pred_fallthru
      _
    // Predicated region
    $region42: #{tpu_custom_call.1} parent=1 // pred_check
      _
    $region43: #{tpu_custom_call.1} parent=1 // pred_check_branch
      %79 = sbr.rel (0) target = $region45
    $region44: #{tpu_custom_call.1} parent=1 // pred_region
      %s81 = ssub.s32 256, 256
      %82 = vsyncadd [#allocation9], %s81
      %s83 = sshll.u32 [#allocation10], 4
      %s84 = int_to_ptr.vmem [resolvable:$true] %s83
      %89 = dma.hbm_to_vmem [thread:$0]  %s10, 256, %s84, [#allocation9], 128, 128, 8
    $region45: #{tpu_custom_call.1} parent=1 // pred_fallthru
      _
    // Predicated region
    $region46: #{tpu_custom_call.1} parent=1 // pred_check
      _
    $region47: #{tpu_custom_call.1} parent=1 // pred_check_branch
      %91 = sbr.rel (0) target = $region49
    $region48: #{tpu_custom_call.1} parent=1 // pred_region
      %92 = dma.done [#allocation3], 48
    $region49: #{tpu_custom_call.1} parent=1 // pred_fallthru
      _
    // Predicated region
    $region50: #{tpu_custom_call.1} parent=1 // pred_check
      _
    $region51: #{tpu_custom_call.1} parent=1 // pred_check_branch
      %94 = sbr.rel (0) target = $region53
    $region52: #{tpu_custom_call.1} parent=1 // pred_region
      %95 = dma.done [#allocation6], 256
    $region53: #{tpu_custom_call.1} parent=1 // pred_fallthru
      _
    // Predicated region
    $region54: #{tpu_custom_call.1} parent=1 // pred_check
      _
    $region55: #{tpu_custom_call.1} parent=1 // pred_check_branch
      %97 = sbr.rel (0) target = $region57
    $region56: #{tpu_custom_call.1} parent=1 // pred_region
      %98 = dma.done [#allocation6], 128
    $region57: #{tpu_custom_call.1} parent=1 // pred_fallthru
      _
    // Predicated region
    $region58: #{tpu_custom_call.1} parent=1 // pred_check
      _
    $region59: #{tpu_custom_call.1} parent=1 // pred_check_branch
      %100 = sbr.rel (0) target = $region61
    $region60: #{tpu_custom_call.1} parent=1 // pred_region
      %101 = dma.done [#allocation9], 1024
    $region61: #{tpu_custom_call.1} parent=1 // pred_fallthru
      _
    // Predicated region
    $region62: #{tpu_custom_call.1} parent=1 // pred_check
      _
    $region63: #{tpu_custom_call.1} parent=1 // pred_check_branch
      %103 = sbr.rel (0) target = $region65
    $region64: #{tpu_custom_call.1} parent=1 // pred_region
      %104 = dma.done [#allocation9], 256
    $region65: #{tpu_custom_call.1} parent=1 // pred_fallthru
      _
    %v106 = vld [vmem:[#allocation10] sm:$0xff]
    %v107 = vld [vmem:[#allocation10 + $0x8] sm:$0x3f]
    %v108 = vlaneseq
    %v109 = vshrl.u32 %v108, 7
    %v110 = vadd.s32 %v109, 8
    %v111 = vadd.s32 %v109, 16
    %v112 = vadd.s32 %v109, 24
    %v113 = vadd.s32 %v109, 32
    %v114 = vadd.s32 %v109, 40
    %v115 = vadd.s32 %v109, 48
    %v116 = vadd.s32 %v109, 56
    %v117 = vadd.s32 %v109, 64
    %v118 = vadd.s32 %v109, 72
    %v119 = vadd.s32 %v109, 80
    %v120 = vadd.s32 %v109, 88
    %v121 = vadd.s32 %v109, 96
    %v122 = vadd.s32 %v109, 104
    %v123 = vadd.s32 %v109, 112
    %v124 = vadd.s32 %v109, 120
    %v125 = vadd.s32 %v109, 128
    %v126 = vadd.s32 %v109, 136
    %v127 = vadd.s32 %v109, 144
    %v128 = vadd.s32 %v109, 152
    %v129 = vadd.s32 %v109, 160
    %v130 = vadd.s32 %v109, 168
    %v131 = vadd.s32 %v109, 176
    %v132 = vadd.s32 %v109, 184
    %v133 = vadd.s32 %v109, 192
    %v134 = vadd.s32 %v109, 200
    %v135 = vadd.s32 %v109, 208
    %v136 = vadd.s32 %v109, 216
    %v137 = vadd.s32 %v109, 224
    %v138 = vadd.s32 %v109, 232
    %v139 = vadd.s32 %v109, 240
    %v140 = vadd.s32 %v109, 248
    %v141 = vadd.s32 %v109, 256
    %v142 = vadd.s32 %v109, 264
    %v143 = vadd.s32 %v109, 272
    %v144 = vadd.s32 %v109, 280
    %v145 = vadd.s32 %v109, 288
    %v146 = vadd.s32 %v109, 296
    %vm147 = vcmp.lt.s32.totalorder %v109, 300
    %vm148 = vcmp.lt.s32.totalorder %v110, 300
    %vm149 = vcmp.lt.s32.totalorder %v111, 300
    %vm150 = vcmp.lt.s32.totalorder %v112, 300
    %vm151 = vcmp.lt.s32.totalorder %v113, 300
    %vm152 = vcmp.lt.s32.totalorder %v114, 300
    %vm153 = vcmp.lt.s32.totalorder %v115, 300
    %vm154 = vcmp.lt.s32.totalorder %v116, 300
    %vm155 = vcmp.lt.s32.totalorder %v117, 300
    %vm156 = vcmp.lt.s32.totalorder %v118, 300
    %vm157 = vcmp.lt.s32.totalorder %v119, 300
    %vm158 = vcmp.lt.s32.totalorder %v120, 300
    %vm159 = vcmp.lt.s32.totalorder %v121, 300
    %vm160 = vcmp.lt.s32.totalorder %v122, 300
    %vm161 = vcmp.lt.s32.totalorder %v123, 300
    %vm162 = vcmp.lt.s32.totalorder %v124, 300
    %vm163 = vcmp.lt.s32.totalorder %v125, 300
    %vm164 = vcmp.lt.s32.totalorder %v126, 300
    %vm165 = vcmp.lt.s32.totalorder %v127, 300
    %vm166 = vcmp.lt.s32.totalorder %v128, 300
    %vm167 = vcmp.lt.s32.totalorder %v129, 300
    %vm168 = vcmp.lt.s32.totalorder %v130, 300
    %vm169 = vcmp.lt.s32.totalorder %v131, 300
    %vm170 = vcmp.lt.s32.totalorder %v132, 300
    %vm171 = vcmp.lt.s32.totalorder %v133, 300
    %vm172 = vcmp.lt.s32.totalorder %v134, 300
    %vm173 = vcmp.lt.s32.totalorder %v135, 300
    %vm174 = vcmp.lt.s32.totalorder %v136, 300
    %vm175 = vcmp.lt.s32.totalorder %v137, 300
    %vm176 = vcmp.lt.s32.totalorder %v138, 300
    %vm177 = vcmp.lt.s32.totalorder %v139, 300
    %vm178 = vcmp.lt.s32.totalorder %v140, 300
    %vm179 = vcmp.lt.s32.totalorder %v141, 300
    %vm180 = vcmp.lt.s32.totalorder %v142, 300
    %vm181 = vcmp.lt.s32.totalorder %v143, 300
    %vm182 = vcmp.lt.s32.totalorder %v144, 300
    %vm183 = vcmp.lt.s32.totalorder %v145, 300
    %vm184 = vcmp.lt.s32.totalorder %v146, 300
    %v185 = vsel %vm147, 1, 0
    %v186 = vsel %vm148, 1, 0
    %v187 = vsel %vm149, 1, 0
    %v188 = vsel %vm150, 1, 0
    %v189 = vsel %vm151, 1, 0
    %v190 = vsel %vm152, 1, 0
    %v191 = vsel %vm153, 1, 0
    %v192 = vsel %vm154, 1, 0
    %v193 = vsel %vm155, 1, 0
    %v194 = vsel %vm156, 1, 0
    %v195 = vsel %vm157, 1, 0
    %v196 = vsel %vm158, 1, 0
    %v197 = vsel %vm159, 1, 0
    %v198 = vsel %vm160, 1, 0
    %v199 = vsel %vm161, 1, 0
    %v200 = vsel %vm162, 1, 0
    %v201 = vsel %vm163, 1, 0
    %v202 = vsel %vm164, 1, 0
    %v203 = vsel %vm165, 1, 0
    %v204 = vsel %vm166, 1, 0
    %v205 = vsel %vm167, 1, 0
    %v206 = vsel %vm168, 1, 0
    %v207 = vsel %vm169, 1, 0
    %v208 = vsel %vm170, 1, 0
    %v209 = vsel %vm171, 1, 0
    %v210 = vsel %vm172, 1, 0
    %v211 = vsel %vm173, 1, 0
    %v212 = vsel %vm174, 1, 0
    %v213 = vsel %vm175, 1, 0
    %v214 = vsel %vm176, 1, 0
    %v215 = vsel %vm177, 1, 0
    %v216 = vsel %vm178, 1, 0
    %v217 = vsel %vm179, 1, 0
    %v218 = vsel %vm180, 1, 0
    %v219 = vsel %vm181, 1, 0
    %v220 = vsel %vm182, 1, 0
    %v221 = vsel %vm183, 1, 0
    %v222 = vsel %vm184, 1, 0
    %v223 = vcvt.s32.f32 %v185
    %v224 = vcvt.s32.f32 %v186
    %v225 = vcvt.s32.f32 %v187
    %v226 = vcvt.s32.f32 %v188
    %v227 = vcvt.s32.f32 %v189
    %v228 = vcvt.s32.f32 %v190
    %v229 = vcvt.s32.f32 %v191
    %v230 = vcvt.s32.f32 %v192
    %v231 = vcvt.s32.f32 %v193
    %v232 = vcvt.s32.f32 %v194
    %v233 = vcvt.s32.f32 %v195
    %v234 = vcvt.s32.f32 %v196
    %v235 = vcvt.s32.f32 %v197
    %v236 = vcvt.s32.f32 %v198
    %v237 = vcvt.s32.f32 %v199
    %v238 = vcvt.s32.f32 %v200
    %v239 = vcvt.s32.f32 %v201
    %v240 = vcvt.s32.f32 %v202
    %v241 = vcvt.s32.f32 %v203
    %v242 = vcvt.s32.f32 %v204
    %v243 = vcvt.s32.f32 %v205
    %v244 = vcvt.s32.f32 %v206
    %v245 = vcvt.s32.f32 %v207
    %v246 = vcvt.s32.f32 %v208
    %v247 = vcvt.s32.f32 %v209
    %v248 = vcvt.s32.f32 %v210
    %v249 = vcvt.s32.f32 %v211
    %v250 = vcvt.s32.f32 %v212
    %v251 = vcvt.s32.f32 %v213
    %v252 = vcvt.s32.f32 %v214
    %v253 = vcvt.s32.f32 %v215
    %v254 = vcvt.s32.f32 %v216
    %v255 = vcvt.s32.f32 %v217
    %v256 = vcvt.s32.f32 %v218
    %v257 = vcvt.s32.f32 %v219
    %v258 = vcvt.s32.f32 %v220
    %v259 = vcvt.s32.f32 %v221
    %v260 = vcvt.s32.f32 %v222
    %v261 = vld [vmem:[%s1] sm:$0xf]
    %v262 = vld [vmem:[%s1 + $0x4] sm:$0xf]
    %v263 = vld [vmem:[%s1 + $0x8] sm:$0xf]
    %v264 = vld [vmem:[%s1 + $0xc] sm:$0xf]
    %v265 = vld [vmem:[%s1 + $0x10] sm:$0xf]
    %v266 = vld [vmem:[%s1 + $0x14] sm:$0xf]
    %v267 = vld [vmem:[%s1 + $0x18] sm:$0xf]
    %v268 = vld [vmem:[%s1 + $0x1c] sm:$0xf]
    %v269 = vld [vmem:[%s1 + $0x20] sm:$0xf]
    %v270 = vld [vmem:[%s1 + $0x24] sm:$0xf]
    %v271 = vld [vmem:[%s1 + $0x28] sm:$0xf]
    %v272 = vld [vmem:[%s1 + $0x2c] sm:$0xf]
    %v273 = vld [vmem:[%s1 + $0x30] sm:$0xf]
    %v274 = vld [vmem:[%s1 + $0x34] sm:$0xf]
    %v275 = vld [vmem:[%s1 + $0x38] sm:$0xf]
    %v276 = vld [vmem:[%s1 + $0x3c] sm:$0xf]
    %v277 = vld [vmem:[%s1 + $0x40] sm:$0xf]
    %v278 = vld [vmem:[%s1 + $0x44] sm:$0xf]
    %v279 = vld [vmem:[%s1 + $0x48] sm:$0xf]
    %v280 = vld [vmem:[%s1 + $0x4c] sm:$0xf]
    %v281 = vld [vmem:[%s1 + $0x50] sm:$0xf]
    %v282 = vld [vmem:[%s1 + $0x54] sm:$0xf]
    %v283 = vld [vmem:[%s1 + $0x58] sm:$0xf]
    %v284 = vld [vmem:[%s1 + $0x5c] sm:$0xf]
    %v285 = vld [vmem:[%s1 + $0x60] sm:$0xf]
    %v286 = vld [vmem:[%s1 + $0x64] sm:$0xf]
    %v287 = vld [vmem:[%s1 + $0x68] sm:$0xf]
    %v288 = vld [vmem:[%s1 + $0x6c] sm:$0xf]
    %v289 = vld [vmem:[%s1 + $0x70] sm:$0xf]
    %v290 = vld [vmem:[%s1 + $0x74] sm:$0xf]
    %v291 = vld [vmem:[%s1 + $0x78] sm:$0xf]
    %v292 = vld [vmem:[%s1 + $0x7c] sm:$0xf]
    %v293 = vld [vmem:[%s1 + $0x80] sm:$0xf]
    %v294 = vld [vmem:[%s1 + $0x84] sm:$0xf]
    %v295 = vld [vmem:[%s1 + $0x88] sm:$0xf]
    %v296 = vld [vmem:[%s1 + $0x8c] sm:$0xf]
    %v297 = vld [vmem:[%s1 + $0x90] sm:$0xf]
    %v298 = vld [vmem:[%s1 + $0x94] sm:$0xf]
    %v299 = vld [vmem:[#allocation5] sm:$0xf]
    %v300 = vld [vmem:[#allocation5 + $0x4] sm:$0xf]
    %v301 = vld [vmem:[#allocation5 + $0x8] sm:$0xf]
    %v302 = vld [vmem:[#allocation5 + $0xc] sm:$0xf]
    %v303 = vlaneseq
    %v304 = vshrl.u32 %v303, 7
    %v305 = vsub.s32 0, %v304
    %v306 = vrot.slane %v106, %v305
    %v345 = vunpack.c.l.b16 %v261
    %v346 = vunpack.c.l.b16 %v262
    %v347 = vunpack.c.l.b16 %v263
    %v348 = vunpack.c.l.b16 %v264
    %v349 = vunpack.c.l.b16 %v265
    %v350 = vunpack.c.l.b16 %v266
    %v351 = vunpack.c.l.b16 %v267
    %v352 = vunpack.c.l.b16 %v268
    %v353 = vunpack.c.l.b16 %v269
    %v354 = vunpack.c.l.b16 %v270
    %v355 = vunpack.c.l.b16 %v271
    %v356 = vunpack.c.l.b16 %v272
    %v357 = vunpack.c.l.b16 %v273
    %v358 = vunpack.c.l.b16 %v274
    %v359 = vunpack.c.l.b16 %v275
    %v360 = vunpack.c.l.b16 %v276
    %v361 = vunpack.c.l.b16 %v277
    %v362 = vunpack.c.l.b16 %v278
    %v363 = vunpack.c.l.b16 %v279
    %v364 = vunpack.c.l.b16 %v280
    %v365 = vunpack.c.l.b16 %v281
    %v366 = vunpack.c.l.b16 %v282
    %v367 = vunpack.c.l.b16 %v283
    %v368 = vunpack.c.l.b16 %v284
    %v369 = vunpack.c.l.b16 %v285
    %v370 = vunpack.c.l.b16 %v286
    %v371 = vunpack.c.l.b16 %v287
    %v372 = vunpack.c.l.b16 %v288
    %v373 = vunpack.c.l.b16 %v289
    %v374 = vunpack.c.l.b16 %v290
    %v375 = vunpack.c.l.b16 %v291
    %v376 = vunpack.c.l.b16 %v292
    %v377 = vunpack.c.l.b16 %v293
    %v378 = vunpack.c.l.b16 %v294
    %v379 = vunpack.c.l.b16 %v295
    %v380 = vunpack.c.l.b16 %v296
    %v381 = vunpack.c.l.b16 %v297
    %v382 = vunpack.c.l.b16 %v298
    %v383 = vpack.c.b16 %v346, %v345
    %v384 = vpack.c.b16 %v348, %v347
    %v385 = vpack.c.b16 %v350, %v349
    %v386 = vpack.c.b16 %v352, %v351
    %v387 = vpack.c.b16 %v354, %v353
    %v388 = vpack.c.b16 %v356, %v355
    %v389 = vpack.c.b16 %v358, %v357
    %v390 = vpack.c.b16 %v360, %v359
    %v391 = vpack.c.b16 %v362, %v361
    %v392 = vpack.c.b16 %v364, %v363
    %v393 = vpack.c.b16 %v366, %v365
    %v394 = vpack.c.b16 %v368, %v367
    %v395 = vpack.c.b16 %v370, %v369
    %v396 = vpack.c.b16 %v372, %v371
    %v397 = vpack.c.b16 %v374, %v373
    %v398 = vpack.c.b16 %v376, %v375
    %v399 = vpack.c.b16 %v378, %v377
    %v400 = vpack.c.b16 %v380, %v379
    %v401 = vpack.c.b16 %v382, %v381
    %v406 = vunpack.c.l.b16 %v299
    %v407 = vunpack.c.l.b16 %v300
    %v408 = vunpack.c.l.b16 %v301
    %v409 = vunpack.c.l.b16 %v302
    %v410 = vpack.c.b16 %v407, %v406
    %v411 = vpack.c.b16 %v409, %v408
    %vm414 = vcmask 261120
    %v416 = vsel %vm414, %v383, 0
    %v419 = vsel %vm414, %v384, 0
    %v422 = vsel %vm414, %v385, 0
    %v425 = vsel %vm414, %v386, 0
    %v428 = vsel %vm414, %v387, 0
    %v431 = vsel %vm414, %v388, 0
    %v434 = vsel %vm414, %v389, 0
    %v437 = vsel %vm414, %v390, 0
    %v440 = vsel %vm414, %v391, 0
    %v443 = vsel %vm414, %v392, 0
    %v446 = vsel %vm414, %v393, 0
    %v449 = vsel %vm414, %v394, 0
    %v452 = vsel %vm414, %v395, 0
    %v455 = vsel %vm414, %v396, 0
    %v458 = vsel %vm414, %v397, 0
    %v461 = vsel %vm414, %v398, 0
    %v464 = vsel %vm414, %v399, 0
    %v467 = vsel %vm414, %v400, 0
    %v470 = vsel %vm414, %v401, 0
    %472 = vmatprep.subr.bf16.mxu0 0
    %473 = vmatpush1.bf16.msra.mxu0 %v410
    %474 = vmatprep.subr.bf16.mxu0 0
    %475 = vmatpush1.bf16.msra.mxu0 %v411
    %476 = vmatprep.subr.bf16.mxu0 0
    %477 = vmatpush1.bf16.msra.mxu0 0
    %478 = vmatprep.subr.bf16.mxu0 0
    %479 = vmatpush1.bf16.msra.mxu0 0
    %480 = vmatprep.subr.bf16.mxu0 0
    %481 = vmatpush1.bf16.msra.mxu0 0
    %482 = vmatprep.subr.bf16.mxu0 0
    %483 = vmatpush1.bf16.msra.mxu0 0
    %484 = vmatprep.subr.bf16.mxu0 0
    %485 = vmatpush1.bf16.msra.mxu0 0
    %486 = vmatprep.subr.bf16.mxu0 0
    %487 = vmatpush1.bf16.msra.mxu0 0
    %488 = vmatprep.subr.bf16.mxu0 0
    %489 = vmatpush1.bf16.msra.mxu0 0
    %490 = vmatprep.subr.bf16.mxu0 0
    %491 = vmatpush1.bf16.msra.mxu0 0
    %492 = vmatprep.subr.bf16.mxu0 0
    %493 = vmatpush1.bf16.msra.mxu0 0
    %494 = vmatprep.subr.bf16.mxu0 0
    %495 = vmatpush1.bf16.msra.mxu0 0
    %496 = vmatprep.subr.bf16.mxu0 0
    %497 = vmatpush1.bf16.msra.mxu0 0
    %498 = vmatprep.subr.bf16.mxu0 0
    %499 = vmatpush1.bf16.msra.mxu0 0
    %500 = vmatprep.subr.bf16.mxu0 0
    %501 = vmatpush1.bf16.msra.mxu0 0
    %502 = vmatprep.subr.bf16.mxu0 0
    %503 = vmatpush1.bf16.msra.mxu0 0
    %504 = vmatprep.mubr.bf16.mxu0 0
    %505 = vmatmul.mubr.bf16.gmra.mrb[0].mxu0 %v416
    %v506 = vpop.f32.mrb[0].mxu0
    %v507 = vadd.f32 %v306, %v506
    %v508 = vpop.f32.mrb[0].mxu0
    %v509 = vpop.f32.mrb[0].mxu0
    %v510 = vadd.f32 %v306, %v509
    %v511 = vpop.f32.mrb[0].mxu0
    %512 = vmatprep.mubr.bf16.mxu0 0
    %513 = vmatmul.mubr.bf16.gmra.mrb[0].mxu0 %v419
    %v514 = vpop.f32.mrb[0].mxu0
    %v515 = vadd.f32 %v306, %v514
    %v516 = vpop.f32.mrb[0].mxu0
    %v517 = vpop.f32.mrb[0].mxu0
    %v518 = vadd.f32 %v306, %v517
    %v519 = vpop.f32.mrb[0].mxu0
    %520 = vmatprep.mubr.bf16.mxu0 0
    %521 = vmatmul.mubr.bf16.gmra.mrb[0].mxu0 %v422
    %v522 = vpop.f32.mrb[0].mxu0
    %v523 = vadd.f32 %v306, %v522
    %v524 = vpop.f32.mrb[0].mxu0
    %v525 = vpop.f32.mrb[0].mxu0
    %v526 = vadd.f32 %v306, %v525
    %v527 = vpop.f32.mrb[0].mxu0
    %528 = vmatprep.mubr.bf16.mxu0 0
    %529 = vmatmul.mubr.bf16.gmra.mrb[0].mxu0 %v425
    %v530 = vpop.f32.mrb[0].mxu0
    %v531 = vadd.f32 %v306, %v530
    %v532 = vpop.f32.mrb[0].mxu0
    %v533 = vpop.f32.mrb[0].mxu0
    %v534 = vadd.f32 %v306, %v533
    %v535 = vpop.f32.mrb[0].mxu0
    %536 = vmatprep.mubr.bf16.mxu0 0
    %537 = vmatmul.mubr.bf16.gmra.mrb[0].mxu0 %v428
    %v538 = vpop.f32.mrb[0].mxu0
    %v539 = vadd.f32 %v306, %v538
    %v540 = vpop.f32.mrb[0].mxu0
    %v541 = vpop.f32.mrb[0].mxu0
    %v542 = vadd.f32 %v306, %v541
    %v543 = vpop.f32.mrb[0].mxu0
    %544 = vmatprep.mubr.bf16.mxu0 0
    %545 = vmatmul.mubr.bf16.gmra.mrb[0].mxu0 %v431
    %v546 = vpop.f32.mrb[0].mxu0
    %v547 = vadd.f32 %v306, %v546
    %v548 = vpop.f32.mrb[0].mxu0
    %v549 = vpop.f32.mrb[0].mxu0
    %v550 = vadd.f32 %v306, %v549
    %v551 = vpop.f32.mrb[0].mxu0
    %552 = vmatprep.mubr.bf16.mxu0 0
    %553 = vmatmul.mubr.bf16.gmra.mrb[0].mxu0 %v434
    %v554 = vpop.f32.mrb[0].mxu0
    %v555 = vadd.f32 %v306, %v554
    %v556 = vpop.f32.mrb[0].mxu0
    %v557 = vpop.f32.mrb[0].mxu0
    %v558 = vadd.f32 %v306, %v557
    %v559 = vpop.f32.mrb[0].mxu0
    %560 = vmatprep.mubr.bf16.mxu0 0
    %561 = vmatmul.mubr.bf16.gmra.mrb[0].mxu0 %v437
    %v562 = vpop.f32.mrb[0].mxu0
    %v563 = vadd.f32 %v306, %v562
    %v564 = vpop.f32.mrb[0].mxu0
    %v565 = vpop.f32.mrb[0].mxu0
    %v566 = vadd.f32 %v306, %v565
    %v567 = vpop.f32.mrb[0].mxu0
    %568 = vmatprep.mubr.bf16.mxu0 0
    %569 = vmatmul.mubr.bf16.gmra.mrb[0].mxu0 %v440
    %v570 = vpop.f32.mrb[0].mxu0
    %v571 = vadd.f32 %v306, %v570
    %v572 = vpop.f32.mrb[0].mxu0
    %v573 = vpop.f32.mrb[0].mxu0
    %v574 = vadd.f32 %v306, %v573
    %v575 = vpop.f32.mrb[0].mxu0
    %576 = vmatprep.mubr.bf16.mxu0 0
    %577 = vmatmul.mubr.bf16.gmra.mrb[0].mxu0 %v443
    %v578 = vpop.f32.mrb[0].mxu0
    %v579 = vadd.f32 %v306, %v578
    %v580 = vpop.f32.mrb[0].mxu0
    %v581 = vpop.f32.mrb[0].mxu0
    %v582 = vadd.f32 %v306, %v581
    %v583 = vpop.f32.mrb[0].mxu0
    %584 = vmatprep.mubr.bf16.mxu0 0
    %585 = vmatmul.mubr.bf16.gmra.mrb[0].mxu0 %v446
    %v586 = vpop.f32.mrb[0].mxu0
    %v587 = vadd.f32 %v306, %v586
    %v588 = vpop.f32.mrb[0].mxu0
    %v589 = vpop.f32.mrb[0].mxu0
    %v590 = vadd.f32 %v306, %v589
    %v591 = vpop.f32.mrb[0].mxu0
    %592 = vmatprep.mubr.bf16.mxu0 0
    %593 = vmatmul.mubr.bf16.gmra.mrb[0].mxu0 %v449
    %v594 = vpop.f32.mrb[0].mxu0
    %v595 = vadd.f32 %v306, %v594
    %v596 = vpop.f32.mrb[0].mxu0
    %v597 = vpop.f32.mrb[0].mxu0
    %v598 = vadd.f32 %v306, %v597
    %v599 = vpop.f32.mrb[0].mxu0
    %600 = vmatprep.mubr.bf16.mxu0 0
    %601 = vmatmul.mubr.bf16.gmra.mrb[0].mxu0 %v452
    %v602 = vpop.f32.mrb[0].mxu0
    %v603 = vadd.f32 %v306, %v602
    %v604 = vpop.f32.mrb[0].mxu0
    %v605 = vpop.f32.mrb[0].mxu0
    %v606 = vadd.f32 %v306, %v605
    %v607 = vpop.f32.mrb[0].mxu0
    %608 = vmatprep.mubr.bf16.mxu0 0
    %609 = vmatmul.mubr.bf16.gmra.mrb[0].mxu0 %v455
    %v610 = vpop.f32.mrb[0].mxu0
    %v611 = vadd.f32 %v306, %v610
    %v612 = vpop.f32.mrb[0].mxu0
    %v613 = vpop.f32.mrb[0].mxu0
    %v614 = vadd.f32 %v306, %v613
    %v615 = vpop.f32.mrb[0].mxu0
    %616 = vmatprep.mubr.bf16.mxu0 0
    %617 = vmatmul.mubr.bf16.gmra.mrb[0].mxu0 %v458
    %v618 = vpop.f32.mrb[0].mxu0
    %v619 = vadd.f32 %v306, %v618
    %v620 = vpop.f32.mrb[0].mxu0
    %v621 = vpop.f32.mrb[0].mxu0
    %v622 = vadd.f32 %v306, %v621
    %v623 = vpop.f32.mrb[0].mxu0
    %624 = vmatprep.mubr.bf16.mxu0 0
    %625 = vmatmul.mubr.bf16.gmra.mrb[0].mxu0 %v461
    %v626 = vpop.f32.mrb[0].mxu0
    %v627 = vadd.f32 %v306, %v626
    %v628 = vpop.f32.mrb[0].mxu0
    %v629 = vpop.f32.mrb[0].mxu0
    %v630 = vadd.f32 %v306, %v629
    %v631 = vpop.f32.mrb[0].mxu0
    %632 = vmatprep.mubr.bf16.mxu0 0
    %633 = vmatmul.mubr.bf16.gmra.mrb[0].mxu0 %v464
    %v634 = vpop.f32.mrb[0].mxu0
    %v635 = vadd.f32 %v306, %v634
    %v636 = vpop.f32.mrb[0].mxu0
    %v637 = vpop.f32.mrb[0].mxu0
    %v638 = vadd.f32 %v306, %v637
    %v639 = vpop.f32.mrb[0].mxu0
    %640 = vmatprep.mubr.bf16.mxu0 0
    %641 = vmatmul.mubr.bf16.gmra.mrb[0].mxu0 %v467
    %v642 = vpop.f32.mrb[0].mxu0
    %v643 = vadd.f32 %v306, %v642
    %v644 = vpop.f32.mrb[0].mxu0
    %v645 = vpop.f32.mrb[0].mxu0
    %v646 = vadd.f32 %v306, %v645
    %v647 = vpop.f32.mrb[0].mxu0
    %648 = vmatprep.mubr.bf16.mxu0 0
    %649 = vmatmul.mubr.bf16.gmra.mrb[0].mxu0 %v470
    %v650 = vpop.f32.mrb[0].mxu0
    %v651 = vadd.f32 %v306, %v650
    %v652 = vpop.f32.mrb[0].mxu0
    %v653 = vpop.f32.mrb[0].mxu0
    %v654 = vadd.f32 %v306, %v653
    %v655 = vpop.f32.mrb[0].mxu0
    %656 = vdwg.mxu0
    %v657 = vmul.f32 %v507, 0.01
    %v658 = vmul.f32 %v510, 0.01
    %v659 = vmul.f32 %v515, 0.01
    %v660 = vmul.f32 %v518, 0.01
    %v661 = vmul.f32 %v523, 0.01
    %v662 = vmul.f32 %v526, 0.01
    %v663 = vmul.f32 %v531, 0.01
    %v664 = vmul.f32 %v534, 0.01
    %v665 = vmul.f32 %v539, 0.01
    %v666 = vmul.f32 %v542, 0.01
    %v667 = vmul.f32 %v547, 0.01
    %v668 = vmul.f32 %v550, 0.01
    %v669 = vmul.f32 %v555, 0.01
    %v670 = vmul.f32 %v558, 0.01
    %v671 = vmul.f32 %v563, 0.01
    %v672 = vmul.f32 %v566, 0.01
    %v673 = vmul.f32 %v571, 0.01
    %v674 = vmul.f32 %v574, 0.01
    %v675 = vmul.f32 %v579, 0.01
    %v676 = vmul.f32 %v582, 0.01
    %v677 = vmul.f32 %v587, 0.01
    %v678 = vmul.f32 %v590, 0.01
    %v679 = vmul.f32 %v595, 0.01
    %v680 = vmul.f32 %v598, 0.01
    %v681 = vmul.f32 %v603, 0.01
    %v682 = vmul.f32 %v606, 0.01
    %v683 = vmul.f32 %v611, 0.01
    %v684 = vmul.f32 %v614, 0.01
    %v685 = vmul.f32 %v619, 0.01
    %v686 = vmul.f32 %v622, 0.01
    %v687 = vmul.f32 %v627, 0.01
    %v688 = vmul.f32 %v630, 0.01
    %v689 = vmul.f32 %v635, 0.01
    %v690 = vmul.f32 %v638, 0.01
    %v691 = vmul.f32 %v643, 0.01
    %v692 = vmul.f32 %v646, 0.01
    %v693 = vmul.f32 %v651, 0.01
    %v694 = vmul.f32 %v654, 0.01
    %v695 = vmax.f32 %v507, %v657
    %v696 = vmax.f32 %v510, %v658
    %v697 = vmax.f32 %v515, %v659
    %v698 = vmax.f32 %v518, %v660
    %v699 = vmax.f32 %v523, %v661
    %v700 = vmax.f32 %v526, %v662
    %v701 = vmax.f32 %v531, %v663
    %v702 = vmax.f32 %v534, %v664
    %v703 = vmax.f32 %v539, %v665
    %v704 = vmax.f32 %v542, %v666
    %v705 = vmax.f32 %v547, %v667
    %v706 = vmax.f32 %v550, %v668
    %v707 = vmax.f32 %v555, %v669
    %v708 = vmax.f32 %v558, %v670
    %v709 = vmax.f32 %v563, %v671
    %v710 = vmax.f32 %v566, %v672
    %v711 = vmax.f32 %v571, %v673
    %v712 = vmax.f32 %v574, %v674
    %v713 = vmax.f32 %v579, %v675
    %v714 = vmax.f32 %v582, %v676
    %v715 = vmax.f32 %v587, %v677
    %v716 = vmax.f32 %v590, %v678
    %v717 = vmax.f32 %v595, %v679
    %v718 = vmax.f32 %v598, %v680
    %v719 = vmax.f32 %v603, %v681
    %v720 = vmax.f32 %v606, %v682
    %v721 = vmax.f32 %v611, %v683
    %v722 = vmax.f32 %v614, %v684
    %v723 = vmax.f32 %v619, %v685
    %v724 = vmax.f32 %v622, %v686
    %v725 = vmax.f32 %v627, %v687
    %v726 = vmax.f32 %v630, %v688
    %v727 = vmax.f32 %v635, %v689
    %v728 = vmax.f32 %v638, %v690
    %v729 = vmax.f32 %v643, %v691
    %v730 = vmax.f32 %v646, %v692
    %v731 = vmax.f32 %v651, %v693
    %v732 = vmax.f32 %v654, %v694
    %v733 = vmul.f32 %v695, %v223
    %v734 = vmul.f32 %v696, %v224
    %v735 = vmul.f32 %v697, %v225
    %v736 = vmul.f32 %v698, %v226
    %v737 = vmul.f32 %v699, %v227
    %v738 = vmul.f32 %v700, %v228
    %v739 = vmul.f32 %v701, %v229
    %v740 = vmul.f32 %v702, %v230
    %v741 = vmul.f32 %v703, %v231
    %v742 = vmul.f32 %v704, %v232
    %v743 = vmul.f32 %v705, %v233
    %v744 = vmul.f32 %v706, %v234
    %v745 = vmul.f32 %v707, %v235
    %v746 = vmul.f32 %v708, %v236
    %v747 = vmul.f32 %v709, %v237
    %v748 = vmul.f32 %v710, %v238
    %v749 = vmul.f32 %v711, %v239
    %v750 = vmul.f32 %v712, %v240
    %v751 = vmul.f32 %v713, %v241
    %v752 = vmul.f32 %v714, %v242
    %v753 = vmul.f32 %v715, %v243
    %v754 = vmul.f32 %v716, %v244
    %v755 = vmul.f32 %v717, %v245
    %v756 = vmul.f32 %v718, %v246
    %v757 = vmul.f32 %v719, %v247
    %v758 = vmul.f32 %v720, %v248
    %v759 = vmul.f32 %v721, %v249
    %v760 = vmul.f32 %v722, %v250
    %v761 = vmul.f32 %v723, %v251
    %v762 = vmul.f32 %v724, %v252
    %v763 = vmul.f32 %v725, %v253
    %v764 = vmul.f32 %v726, %v254
    %v765 = vmul.f32 %v727, %v255
    %v766 = vmul.f32 %v728, %v256
    %v767 = vmul.f32 %v729, %v257
    %v768 = vmul.f32 %v730, %v258
    %v769 = vmul.f32 %v731, %v259
    %v770 = vmul.f32 %v732, %v260
    %v771 = vadd.f32 %v733, %v734
    %v772 = vadd.f32 %v771, %v735
    %v773 = vadd.f32 %v772, %v736
    %v774 = vadd.f32 %v773, %v737
    %v775 = vadd.f32 %v774, %v738
    %v776 = vadd.f32 %v775, %v739
    %v777 = vadd.f32 %v776, %v740
    %v778 = vadd.f32 %v777, %v741
    %v779 = vadd.f32 %v778, %v742
    %v780 = vadd.f32 %v779, %v743
    %v781 = vadd.f32 %v780, %v744
    %v782 = vadd.f32 %v781, %v745
    %v783 = vadd.f32 %v782, %v746
    %v784 = vadd.f32 %v783, %v747
    %v785 = vadd.f32 %v784, %v748
    %v786 = vadd.f32 %v785, %v749
    %v787 = vadd.f32 %v786, %v750
    %v788 = vadd.f32 %v787, %v751
    %v789 = vadd.f32 %v788, %v752
    %v790 = vadd.f32 %v789, %v753
    %v791 = vadd.f32 %v790, %v754
    %v792 = vadd.f32 %v791, %v755
    %v793 = vadd.f32 %v792, %v756
    %v794 = vadd.f32 %v793, %v757
    %v795 = vadd.f32 %v794, %v758
    %v796 = vadd.f32 %v795, %v759
    %v797 = vadd.f32 %v796, %v760
    %v798 = vadd.f32 %v797, %v761
    %v799 = vadd.f32 %v798, %v762
    %v800 = vadd.f32 %v799, %v763
    %v801 = vadd.f32 %v800, %v764
    %v802 = vadd.f32 %v801, %v765
    %v803 = vadd.f32 %v802, %v766
    %v804 = vadd.f32 %v803, %v767
    %v805 = vadd.f32 %v804, %v768
    %v806 = vadd.f32 %v805, %v769
    %v807 = vadd.f32 %v806, %v770
    %v808 = vrot.slane %v807, 4
    %v809 = vadd.f32 %v807, %v808
    %v810 = vrot.slane %v809, 2
    %v811 = vadd.f32 %v809, %v810
    %v812 = vrot.slane %v811, 1
    %v813 = vadd.f32 %v811, %v812
    %v814 = vmul.f32 %v733, %v733
    %v815 = vmul.f32 %v734, %v734
    %v816 = vmul.f32 %v735, %v735
    %v817 = vmul.f32 %v736, %v736
    %v818 = vmul.f32 %v737, %v737
    %v819 = vmul.f32 %v738, %v738
    %v820 = vmul.f32 %v739, %v739
    %v821 = vmul.f32 %v740, %v740
    %v822 = vmul.f32 %v741, %v741
    %v823 = vmul.f32 %v742, %v742
    %v824 = vmul.f32 %v743, %v743
    %v825 = vmul.f32 %v744, %v744
    %v826 = vmul.f32 %v745, %v745
    %v827 = vmul.f32 %v746, %v746
    %v828 = vmul.f32 %v747, %v747
    %v829 = vmul.f32 %v748, %v748
    %v830 = vmul.f32 %v749, %v749
    %v831 = vmul.f32 %v750, %v750
    %v832 = vmul.f32 %v751, %v751
    %v833 = vmul.f32 %v752, %v752
    %v834 = vmul.f32 %v753, %v753
    %v835 = vmul.f32 %v754, %v754
    %v836 = vmul.f32 %v755, %v755
    %v837 = vmul.f32 %v756, %v756
    %v838 = vmul.f32 %v757, %v757
    %v839 = vmul.f32 %v758, %v758
    %v840 = vmul.f32 %v759, %v759
    %v841 = vmul.f32 %v760, %v760
    %v842 = vmul.f32 %v761, %v761
    %v843 = vmul.f32 %v762, %v762
    %v844 = vmul.f32 %v763, %v763
    %v845 = vmul.f32 %v764, %v764
    %v846 = vmul.f32 %v765, %v765
    %v847 = vmul.f32 %v766, %v766
    %v848 = vmul.f32 %v767, %v767
    %v849 = vmul.f32 %v768, %v768
    %v850 = vmul.f32 %v769, %v769
    %v851 = vmul.f32 %v770, %v770
    %v852 = vadd.f32 %v814, %v815
    %v853 = vadd.f32 %v852, %v816
    %v854 = vadd.f32 %v853, %v817
    %v855 = vadd.f32 %v854, %v818
    %v856 = vadd.f32 %v855, %v819
    %v857 = vadd.f32 %v856, %v820
    %v858 = vadd.f32 %v857, %v821
    %v859 = vadd.f32 %v858, %v822
    %v860 = vadd.f32 %v859, %v823
    %v861 = vadd.f32 %v860, %v824
    %v862 = vadd.f32 %v861, %v825
    %v863 = vadd.f32 %v862, %v826
    %v864 = vadd.f32 %v863, %v827
    %v865 = vadd.f32 %v864, %v828
    %v866 = vadd.f32 %v865, %v829
    %v867 = vadd.f32 %v866, %v830
    %v868 = vadd.f32 %v867, %v831
    %v869 = vadd.f32 %v868, %v832
    %v870 = vadd.f32 %v869, %v833
    %v871 = vadd.f32 %v870, %v834
    %v872 = vadd.f32 %v871, %v835
    %v873 = vadd.f32 %v872, %v836
    %v874 = vadd.f32 %v873, %v837
    %v875 = vadd.f32 %v874, %v838
    %v876 = vadd.f32 %v875, %v839
    %v877 = vadd.f32 %v876, %v840
    %v878 = vadd.f32 %v877, %v841
    %v879 = vadd.f32 %v878, %v842
    %v880 = vadd.f32 %v879, %v843
    %v881 = vadd.f32 %v880, %v844
    %v882 = vadd.f32 %v881, %v845
    %v883 = vadd.f32 %v882, %v846
    %v884 = vadd.f32 %v883, %v847
    %v885 = vadd.f32 %v884, %v848
    %v886 = vadd.f32 %v885, %v849
    %v887 = vadd.f32 %v886, %v850
    %v888 = vadd.f32 %v887, %v851
    %v889 = vrot.slane %v888, 4
    %v890 = vadd.f32 %v888, %v889
    %v891 = vrot.slane %v890, 2
    %v892 = vadd.f32 %v890, %v891
    %v893 = vrot.slane %v892, 1
    %v894 = vadd.f32 %v892, %v893
    %v895 = vmul.f32 %v813, 0.0033333334
    %v896 = vmul.f32 %v894, 0.0033333334
    %v897 = vmul.f32 %v895, %v895
    %v898 = vsub.f32 %v896, %v897
    %v899 = vmax.f32 %v898, 0.0
    %v900 = vadd.f32 %v899, 1e-05
    %v901 = vrsqrt.pop %v900
    %v902 = vmul.f32 %v106, %v901
    %v903 = vmul.f32 %v895, %v902
    %v905 = vrot.slane %v903, 7
    %v907 = vsub.f32 %v106, %v905
    %v908 = vlaneseq
    %v909 = vshrl.u32 %v908, 7
    %v910 = vsub.s32 1, %v909
    %v911 = vrot.slane %v902, %v910
    %v912 = vmul.f32 %v695, %v911
    %v913 = vmul.f32 %v696, %v911
    %v914 = vmul.f32 %v697, %v911
    %v915 = vmul.f32 %v698, %v911
    %v916 = vmul.f32 %v699, %v911
    %v917 = vmul.f32 %v700, %v911
    %v918 = vmul.f32 %v701, %v911
    %v919 = vmul.f32 %v702, %v911
    %v920 = vmul.f32 %v703, %v911
    %v921 = vmul.f32 %v704, %v911
    %v922 = vmul.f32 %v705, %v911
    %v923 = vmul.f32 %v706, %v911
    %v924 = vmul.f32 %v707, %v911
    %v925 = vmul.f32 %v708, %v911
    %v926 = vmul.f32 %v709, %v911
    %v927 = vmul.f32 %v710, %v911
    %v928 = vmul.f32 %v711, %v911
    %v929 = vmul.f32 %v712, %v911
    %v930 = vmul.f32 %v713, %v911
    %v931 = vmul.f32 %v714, %v911
    %v932 = vmul.f32 %v715, %v911
    %v933 = vmul.f32 %v716, %v911
    %v934 = vmul.f32 %v717, %v911
    %v935 = vmul.f32 %v718, %v911
    %v936 = vmul.f32 %v719, %v911
    %v937 = vmul.f32 %v720, %v911
    %v938 = vmul.f32 %v721, %v911
    %v939 = vmul.f32 %v722, %v911
    %v940 = vmul.f32 %v723, %v911
    %v941 = vmul.f32 %v724, %v911
    %v942 = vmul.f32 %v725, %v911
    %v943 = vmul.f32 %v726, %v911
    %v944 = vmul.f32 %v727, %v911
    %v945 = vmul.f32 %v728, %v911
    %v946 = vmul.f32 %v729, %v911
    %v947 = vmul.f32 %v730, %v911
    %v948 = vmul.f32 %v731, %v911
    %v949 = vmul.f32 %v732, %v911
    %v950 = vlaneseq
    %v951 = vshrl.u32 %v950, 7
    %v952 = vsub.s32 2, %v951
    %v953 = vrot.slane %v907, %v952
    %v954 = vadd.f32 %v912, %v953
    %v955 = vadd.f32 %v913, %v953
    %v956 = vadd.f32 %v914, %v953
    %v957 = vadd.f32 %v915, %v953
    %v958 = vadd.f32 %v916, %v953
    %v959 = vadd.f32 %v917, %v953
    %v960 = vadd.f32 %v918, %v953
    %v961 = vadd.f32 %v919, %v953
    %v962 = vadd.f32 %v920, %v953
    %v963 = vadd.f32 %v921, %v953
    %v964 = vadd.f32 %v922, %v953
    %v965 = vadd.f32 %v923, %v953
    %v966 = vadd.f32 %v924, %v953
    %v967 = vadd.f32 %v925, %v953
    %v968 = vadd.f32 %v926, %v953
    %v969 = vadd.f32 %v927, %v953
    %v970 = vadd.f32 %v928, %v953
    %v971 = vadd.f32 %v929, %v953
    %v972 = vadd.f32 %v930, %v953
    %v973 = vadd.f32 %v931, %v953
    %v974 = vadd.f32 %v932, %v953
    %v975 = vadd.f32 %v933, %v953
    %v976 = vadd.f32 %v934, %v953
    %v977 = vadd.f32 %v935, %v953
    %v978 = vadd.f32 %v936, %v953
    %v979 = vadd.f32 %v937, %v953
    %v980 = vadd.f32 %v938, %v953
    %v981 = vadd.f32 %v939, %v953
    %v982 = vadd.f32 %v940, %v953
    %v983 = vadd.f32 %v941, %v953
    %v984 = vadd.f32 %v942, %v953
    %v985 = vadd.f32 %v943, %v953
    %v986 = vadd.f32 %v944, %v953
    %v987 = vadd.f32 %v945, %v953
    %v988 = vadd.f32 %v946, %v953
    %v989 = vadd.f32 %v947, %v953
    %v990 = vadd.f32 %v948, %v953
    %v991 = vadd.f32 %v949, %v953
    %v992 = vpack.c.bf16 %v955, %v954
    %v993 = vpack.c.bf16 %v957, %v956
    %v994 = vpack.c.bf16 %v959, %v958
    %v995 = vpack.c.bf16 %v961, %v960
    %v996 = vpack.c.bf16 %v963, %v962
    %v997 = vpack.c.bf16 %v965, %v964
    %v998 = vpack.c.bf16 %v967, %v966
    %v999 = vpack.c.bf16 %v969, %v968
    %v1000 = vpack.c.bf16 %v971, %v970
    %v1001 = vpack.c.bf16 %v973, %v972
    %v1002 = vpack.c.bf16 %v975, %v974
    %v1003 = vpack.c.bf16 %v977, %v976
    %v1004 = vpack.c.bf16 %v979, %v978
    %v1005 = vpack.c.bf16 %v981, %v980
    %v1006 = vpack.c.bf16 %v983, %v982
    %v1007 = vpack.c.bf16 %v985, %v984
    %v1008 = vpack.c.bf16 %v987, %v986
    %v1009 = vpack.c.bf16 %v989, %v988
    %v1010 = vpack.c.bf16 %v991, %v990
    %v1011 = vld [vmem:[%s4] sm:$0xf]
    %v1012 = vld [vmem:[%s4 + $0x4] sm:$0xf]
    %v1013 = vld [vmem:[%s4 + $0x8] sm:$0xf]
    %v1014 = vld [vmem:[%s4 + $0xc] sm:$0xf]
    %v1015 = vld [vmem:[%s4 + $0x10] sm:$0xf]
    %v1016 = vld [vmem:[%s4 + $0x14] sm:$0xf]
    %v1017 = vld [vmem:[%s4 + $0x18] sm:$0xf]
    %v1018 = vld [vmem:[%s4 + $0x1c] sm:$0xf]
    %v1019 = vld [vmem:[%s4 + $0x20] sm:$0xf]
    %v1020 = vld [vmem:[%s4 + $0x24] sm:$0xf]
    %v1021 = vld [vmem:[%s4 + $0x28] sm:$0xf]
    %v1022 = vld [vmem:[%s4 + $0x2c] sm:$0xf]
    %v1023 = vld [vmem:[%s4 + $0x30] sm:$0xf]
    %v1024 = vld [vmem:[%s4 + $0x34] sm:$0xf]
    %v1025 = vld [vmem:[%s4 + $0x38] sm:$0xf]
    %v1026 = vld [vmem:[%s4 + $0x3c] sm:$0xf]
    %v1027 = vlaneseq
    %v1028 = vshrl.u32 %v1027, 7
    %v1029 = vsub.s32 3, %v1028
    %v1030 = vrot.slane %v106, %v1029
    %v1047 = vunpack.c.l.b16 %v1011
    %v1048 = vunpack.c.l.b16 %v1012
    %v1049 = vunpack.c.l.b16 %v1013
    %v1050 = vunpack.c.l.b16 %v1014
    %v1051 = vunpack.c.l.b16 %v1015
    %v1052 = vunpack.c.l.b16 %v1016
    %v1053 = vunpack.c.l.b16 %v1017
    %v1054 = vunpack.c.l.b16 %v1018
    %v1055 = vunpack.c.l.b16 %v1019
    %v1056 = vunpack.c.l.b16 %v1020
    %v1057 = vunpack.c.l.b16 %v1021
    %v1058 = vunpack.c.l.b16 %v1022
    %v1059 = vunpack.c.l.b16 %v1023
    %v1060 = vunpack.c.l.b16 %v1024
    %v1061 = vunpack.c.l.b16 %v1025
    %v1062 = vunpack.c.l.b16 %v1026
    %v1063 = vpack.c.b16 %v1048, %v1047
    %v1064 = vpack.c.b16 %v1050, %v1049
    %v1065 = vpack.c.b16 %v1052, %v1051
    %v1066 = vpack.c.b16 %v1054, %v1053
    %v1067 = vpack.c.b16 %v1056, %v1055
    %v1068 = vpack.c.b16 %v1058, %v1057
    %v1069 = vpack.c.b16 %v1060, %v1059
    %v1070 = vpack.c.b16 %v1062, %v1061
    %1079 = vmatprep.subr.bf16.mxu0 0
    %1080 = vmatpush1.bf16.msra.mxu0 %v1063
    %1081 = vmatprep.subr.bf16.mxu0 0
    %1082 = vmatpush1.bf16.msra.mxu0 %v1064
    %1083 = vmatprep.subr.bf16.mxu0 0
    %1084 = vmatpush1.bf16.msra.mxu0 %v1065
    %1085 = vmatprep.subr.bf16.mxu0 0
    %1086 = vmatpush1.bf16.msra.mxu0 %v1066
    %1087 = vmatprep.subr.bf16.mxu0 0
    %1088 = vmatpush1.bf16.msra.mxu0 %v1067
    %1089 = vmatprep.subr.bf16.mxu0 0
    %1090 = vmatpush1.bf16.msra.mxu0 %v1068
    %1091 = vmatprep.subr.bf16.mxu0 0
    %1092 = vmatpush1.bf16.msra.mxu0 %v1069
    %1093 = vmatprep.subr.bf16.mxu0 0
    %1094 = vmatpush1.bf16.msra.mxu0 %v1070
    %1095 = vmatprep.subr.bf16.mxu0 0
    %1096 = vmatpush1.bf16.msra.mxu0 0
    %1097 = vmatprep.subr.bf16.mxu0 0
    %1098 = vmatpush1.bf16.msra.mxu0 0
    %1099 = vmatprep.subr.bf16.mxu0 0
    %1100 = vmatpush1.bf16.msra.mxu0 0
    %1101 = vmatprep.subr.bf16.mxu0 0
    %1102 = vmatpush1.bf16.msra.mxu0 0
    %1103 = vmatprep.subr.bf16.mxu0 0
    %1104 = vmatpush1.bf16.msra.mxu0 0
    %1105 = vmatprep.subr.bf16.mxu0 0
    %1106 = vmatpush1.bf16.msra.mxu0 0
    %1107 = vmatprep.subr.bf16.mxu0 0
    %1108 = vmatpush1.bf16.msra.mxu0 0
    %1109 = vmatprep.subr.bf16.mxu0 0
    %1110 = vmatpush1.bf16.msra.mxu0 0
    %1111 = vmatprep.mubr.bf16.mxu0 0
    %1112 = vmatmul.mubr.bf16.gmra.mrb[0].mxu0 %v992
    %v1113 = vpop.f32.mrb[0].mxu0
    %v1114 = vadd.f32 %v1030, %v1113
    %v1115 = vpop.f32.mrb[0].mxu0
    %v1116 = vpop.f32.mrb[0].mxu0
    %v1117 = vadd.f32 %v1030, %v1116
    %v1118 = vpop.f32.mrb[0].mxu0
    %1119 = vmatprep.mubr.bf16.mxu0 0
    %1120 = vmatmul.mubr.bf16.gmra.mrb[0].mxu0 %v993
    %v1121 = vpop.f32.mrb[0].mxu0
    %v1122 = vadd.f32 %v1030, %v1121
    %v1123 = vpop.f32.mrb[0].mxu0
    %v1124 = vpop.f32.mrb[0].mxu0
    %v1125 = vadd.f32 %v1030, %v1124
    %v1126 = vpop.f32.mrb[0].mxu0
    %1127 = vmatprep.mubr.bf16.mxu0 0
    %1128 = vmatmul.mubr.bf16.gmra.mrb[0].mxu0 %v994
    %v1129 = vpop.f32.mrb[0].mxu0
    %v1130 = vadd.f32 %v1030, %v1129
    %v1131 = vpop.f32.mrb[0].mxu0
    %v1132 = vpop.f32.mrb[0].mxu0
    %v1133 = vadd.f32 %v1030, %v1132
    %v1134 = vpop.f32.mrb[0].mxu0
    %1135 = vmatprep.mubr.bf16.mxu0 0
    %1136 = vmatmul.mubr.bf16.gmra.mrb[0].mxu0 %v995
    %v1137 = vpop.f32.mrb[0].mxu0
    %v1138 = vadd.f32 %v1030, %v1137
    %v1139 = vpop.f32.mrb[0].mxu0
    %v1140 = vpop.f32.mrb[0].mxu0
    %v1141 = vadd.f32 %v1030, %v1140
    %v1142 = vpop.f32.mrb[0].mxu0
    %1143 = vmatprep.mubr.bf16.mxu0 0
    %1144 = vmatmul.mubr.bf16.gmra.mrb[0].mxu0 %v996
    %v1145 = vpop.f32.mrb[0].mxu0
    %v1146 = vadd.f32 %v1030, %v1145
    %v1147 = vpop.f32.mrb[0].mxu0
    %v1148 = vpop.f32.mrb[0].mxu0
    %v1149 = vadd.f32 %v1030, %v1148
    %v1150 = vpop.f32.mrb[0].mxu0
    %1151 = vmatprep.mubr.bf16.mxu0 0
    %1152 = vmatmul.mubr.bf16.gmra.mrb[0].mxu0 %v997
    %v1153 = vpop.f32.mrb[0].mxu0
    %v1154 = vadd.f32 %v1030, %v1153
    %v1155 = vpop.f32.mrb[0].mxu0
    %v1156 = vpop.f32.mrb[0].mxu0
    %v1157 = vadd.f32 %v1030, %v1156
    %v1158 = vpop.f32.mrb[0].mxu0
    %1159 = vmatprep.mubr.bf16.mxu0 0
    %1160 = vmatmul.mubr.bf16.gmra.mrb[0].mxu0 %v998
    %v1161 = vpop.f32.mrb[0].mxu0
    %v1162 = vadd.f32 %v1030, %v1161
    %v1163 = vpop.f32.mrb[0].mxu0
    %v1164 = vpop.f32.mrb[0].mxu0
    %v1165 = vadd.f32 %v1030, %v1164
    %v1166 = vpop.f32.mrb[0].mxu0
    %1167 = vmatprep.mubr.bf16.mxu0 0
    %1168 = vmatmul.mubr.bf16.gmra.mrb[0].mxu0 %v999
    %v1169 = vpop.f32.mrb[0].mxu0
    %v1170 = vadd.f32 %v1030, %v1169
    %v1171 = vpop.f32.mrb[0].mxu0
    %v1172 = vpop.f32.mrb[0].mxu0
    %v1173 = vadd.f32 %v1030, %v1172
    %v1174 = vpop.f32.mrb[0].mxu0
    %1175 = vmatprep.mubr.bf16.mxu0 0
    %1176 = vmatmul.mubr.bf16.gmra.mrb[0].mxu0 %v1000
    %v1177 = vpop.f32.mrb[0].mxu0
    %v1178 = vadd.f32 %v1030, %v1177
    %v1179 = vpop.f32.mrb[0].mxu0
    %v1180 = vpop.f32.mrb[0].mxu0
    %v1181 = vadd.f32 %v1030, %v1180
    %v1182 = vpop.f32.mrb[0].mxu0
    %1183 = vmatprep.mubr.bf16.mxu0 0
    %1184 = vmatmul.mubr.bf16.gmra.mrb[0].mxu0 %v1001
    %v1185 = vpop.f32.mrb[0].mxu0
    %v1186 = vadd.f32 %v1030, %v1185
    %v1187 = vpop.f32.mrb[0].mxu0
    %v1188 = vpop.f32.mrb[0].mxu0
    %v1189 = vadd.f32 %v1030, %v1188
    %v1190 = vpop.f32.mrb[0].mxu0
    %1191 = vmatprep.mubr.bf16.mxu0 0
    %1192 = vmatmul.mubr.bf16.gmra.mrb[0].mxu0 %v1002
    %v1193 = vpop.f32.mrb[0].mxu0
    %v1194 = vadd.f32 %v1030, %v1193
    %v1195 = vpop.f32.mrb[0].mxu0
    %v1196 = vpop.f32.mrb[0].mxu0
    %v1197 = vadd.f32 %v1030, %v1196
    %v1198 = vpop.f32.mrb[0].mxu0
    %1199 = vmatprep.mubr.bf16.mxu0 0
    %1200 = vmatmul.mubr.bf16.gmra.mrb[0].mxu0 %v1003
    %v1201 = vpop.f32.mrb[0].mxu0
    %v1202 = vadd.f32 %v1030, %v1201
    %v1203 = vpop.f32.mrb[0].mxu0
    %v1204 = vpop.f32.mrb[0].mxu0
    %v1205 = vadd.f32 %v1030, %v1204
    %v1206 = vpop.f32.mrb[0].mxu0
    %1207 = vmatprep.mubr.bf16.mxu0 0
    %1208 = vmatmul.mubr.bf16.gmra.mrb[0].mxu0 %v1004
    %v1209 = vpop.f32.mrb[0].mxu0
    %v1210 = vadd.f32 %v1030, %v1209
    %v1211 = vpop.f32.mrb[0].mxu0
    %v1212 = vpop.f32.mrb[0].mxu0
    %v1213 = vadd.f32 %v1030, %v1212
    %v1214 = vpop.f32.mrb[0].mxu0
    %1215 = vmatprep.mubr.bf16.mxu0 0
    %1216 = vmatmul.mubr.bf16.gmra.mrb[0].mxu0 %v1005
    %v1217 = vpop.f32.mrb[0].mxu0
    %v1218 = vadd.f32 %v1030, %v1217
    %v1219 = vpop.f32.mrb[0].mxu0
    %v1220 = vpop.f32.mrb[0].mxu0
    %v1221 = vadd.f32 %v1030, %v1220
    %v1222 = vpop.f32.mrb[0].mxu0
    %1223 = vmatprep.mubr.bf16.mxu0 0
    %1224 = vmatmul.mubr.bf16.gmra.mrb[0].mxu0 %v1006
    %v1225 = vpop.f32.mrb[0].mxu0
    %v1226 = vadd.f32 %v1030, %v1225
    %v1227 = vpop.f32.mrb[0].mxu0
    %v1228 = vpop.f32.mrb[0].mxu0
    %v1229 = vadd.f32 %v1030, %v1228
    %v1230 = vpop.f32.mrb[0].mxu0
    %1231 = vmatprep.mubr.bf16.mxu0 0
    %1232 = vmatmul.mubr.bf16.gmra.mrb[0].mxu0 %v1007
    %v1233 = vpop.f32.mrb[0].mxu0
    %v1234 = vadd.f32 %v1030, %v1233
    %v1235 = vpop.f32.mrb[0].mxu0
    %v1236 = vpop.f32.mrb[0].mxu0
    %v1237 = vadd.f32 %v1030, %v1236
    %v1238 = vpop.f32.mrb[0].mxu0
    %1239 = vmatprep.mubr.bf16.mxu0 0
    %1240 = vmatmul.mubr.bf16.gmra.mrb[0].mxu0 %v1008
    %v1241 = vpop.f32.mrb[0].mxu0
    %v1242 = vadd.f32 %v1030, %v1241
    %v1243 = vpop.f32.mrb[0].mxu0
    %v1244 = vpop.f32.mrb[0].mxu0
    %v1245 = vadd.f32 %v1030, %v1244
    %v1246 = vpop.f32.mrb[0].mxu0
    %1247 = vmatprep.mubr.bf16.mxu0 0
    %1248 = vmatmul.mubr.bf16.gmra.mrb[0].mxu0 %v1009
    %v1249 = vpop.f32.mrb[0].mxu0
    %v1250 = vadd.f32 %v1030, %v1249
    %v1251 = vpop.f32.mrb[0].mxu0
    %v1252 = vpop.f32.mrb[0].mxu0
    %v1253 = vadd.f32 %v1030, %v1252
    %v1254 = vpop.f32.mrb[0].mxu0
    %1255 = vmatprep.mubr.bf16.mxu0 0
    %1256 = vmatmul.mubr.bf16.gmra.mrb[0].mxu0 %v1010
    %v1257 = vpop.f32.mrb[0].mxu0
    %v1258 = vadd.f32 %v1030, %v1257
    %v1259 = vpop.f32.mrb[0].mxu0
    %v1260 = vpop.f32.mrb[0].mxu0
    %v1261 = vadd.f32 %v1030, %v1260
    %v1262 = vpop.f32.mrb[0].mxu0
    %1263 = vdwg.mxu0
    %v1264 = vmul.f32 %v1114, 0.01
    %v1265 = vmul.f32 %v1117, 0.01
    %v1266 = vmul.f32 %v1122, 0.01
    %v1267 = vmul.f32 %v1125, 0.01
    %v1268 = vmul.f32 %v1130, 0.01
    %v1269 = vmul.f32 %v1133, 0.01
    %v1270 = vmul.f32 %v1138, 0.01
    %v1271 = vmul.f32 %v1141, 0.01
    %v1272 = vmul.f32 %v1146, 0.01
    %v1273 = vmul.f32 %v1149, 0.01
    %v1274 = vmul.f32 %v1154, 0.01
    %v1275 = vmul.f32 %v1157, 0.01
    %v1276 = vmul.f32 %v1162, 0.01
    %v1277 = vmul.f32 %v1165, 0.01
    %v1278 = vmul.f32 %v1170, 0.01
    %v1279 = vmul.f32 %v1173, 0.01
    %v1280 = vmul.f32 %v1178, 0.01
    %v1281 = vmul.f32 %v1181, 0.01
    %v1282 = vmul.f32 %v1186, 0.01
    %v1283 = vmul.f32 %v1189, 0.01
    %v1284 = vmul.f32 %v1194, 0.01
    %v1285 = vmul.f32 %v1197, 0.01
    %v1286 = vmul.f32 %v1202, 0.01
    %v1287 = vmul.f32 %v1205, 0.01
    %v1288 = vmul.f32 %v1210, 0.01
    %v1289 = vmul.f32 %v1213, 0.01
    %v1290 = vmul.f32 %v1218, 0.01
    %v1291 = vmul.f32 %v1221, 0.01
    %v1292 = vmul.f32 %v1226, 0.01
    %v1293 = vmul.f32 %v1229, 0.01
    %v1294 = vmul.f32 %v1234, 0.01
    %v1295 = vmul.f32 %v1237, 0.01
    %v1296 = vmul.f32 %v1242, 0.01
    %v1297 = vmul.f32 %v1245, 0.01
    %v1298 = vmul.f32 %v1250, 0.01
    %v1299 = vmul.f32 %v1253, 0.01
    %v1300 = vmul.f32 %v1258, 0.01
    %v1301 = vmul.f32 %v1261, 0.01
    %v1302 = vmax.f32 %v1114, %v1264
    %v1303 = vmax.f32 %v1117, %v1265
    %v1304 = vmax.f32 %v1122, %v1266
    %v1305 = vmax.f32 %v1125, %v1267
    %v1306 = vmax.f32 %v1130, %v1268
    %v1307 = vmax.f32 %v1133, %v1269
    %v1308 = vmax.f32 %v1138, %v1270
    %v1309 = vmax.f32 %v1141, %v1271
    %v1310 = vmax.f32 %v1146, %v1272
    %v1311 = vmax.f32 %v1149, %v1273
    %v1312 = vmax.f32 %v1154, %v1274
    %v1313 = vmax.f32 %v1157, %v1275
    %v1314 = vmax.f32 %v1162, %v1276
    %v1315 = vmax.f32 %v1165, %v1277
    %v1316 = vmax.f32 %v1170, %v1278
    %v1317 = vmax.f32 %v1173, %v1279
    %v1318 = vmax.f32 %v1178, %v1280
    %v1319 = vmax.f32 %v1181, %v1281
    %v1320 = vmax.f32 %v1186, %v1282
    %v1321 = vmax.f32 %v1189, %v1283
    %v1322 = vmax.f32 %v1194, %v1284
    %v1323 = vmax.f32 %v1197, %v1285
    %v1324 = vmax.f32 %v1202, %v1286
    %v1325 = vmax.f32 %v1205, %v1287
    %v1326 = vmax.f32 %v1210, %v1288
    %v1327 = vmax.f32 %v1213, %v1289
    %v1328 = vmax.f32 %v1218, %v1290
    %v1329 = vmax.f32 %v1221, %v1291
    %v1330 = vmax.f32 %v1226, %v1292
    %v1331 = vmax.f32 %v1229, %v1293
    %v1332 = vmax.f32 %v1234, %v1294
    %v1333 = vmax.f32 %v1237, %v1295
    %v1334 = vmax.f32 %v1242, %v1296
    %v1335 = vmax.f32 %v1245, %v1297
    %v1336 = vmax.f32 %v1250, %v1298
    %v1337 = vmax.f32 %v1253, %v1299
    %v1338 = vmax.f32 %v1258, %v1300
    %v1339 = vmax.f32 %v1261, %v1301
    %v1340 = vmul.f32 %v1302, %v223
    %v1341 = vmul.f32 %v1303, %v224
    %v1342 = vmul.f32 %v1304, %v225
    %v1343 = vmul.f32 %v1305, %v226
    %v1344 = vmul.f32 %v1306, %v227
    %v1345 = vmul.f32 %v1307, %v228
    %v1346 = vmul.f32 %v1308, %v229
    %v1347 = vmul.f32 %v1309, %v230
    %v1348 = vmul.f32 %v1310, %v231
    %v1349 = vmul.f32 %v1311, %v232
    %v1350 = vmul.f32 %v1312, %v233
    %v1351 = vmul.f32 %v1313, %v234
    %v1352 = vmul.f32 %v1314, %v235
    %v1353 = vmul.f32 %v1315, %v236
    %v1354 = vmul.f32 %v1316, %v237
    %v1355 = vmul.f32 %v1317, %v238
    %v1356 = vmul.f32 %v1318, %v239
    %v1357 = vmul.f32 %v1319, %v240
    %v1358 = vmul.f32 %v1320, %v241
    %v1359 = vmul.f32 %v1321, %v242
    %v1360 = vmul.f32 %v1322, %v243
    %v1361 = vmul.f32 %v1323, %v244
    %v1362 = vmul.f32 %v1324, %v245
    %v1363 = vmul.f32 %v1325, %v246
    %v1364 = vmul.f32 %v1326, %v247
    %v1365 = vmul.f32 %v1327, %v248
    %v1366 = vmul.f32 %v1328, %v249
    %v1367 = vmul.f32 %v1329, %v250
    %v1368 = vmul.f32 %v1330, %v251
    %v1369 = vmul.f32 %v1331, %v252
    %v1370 = vmul.f32 %v1332, %v253
    %v1371 = vmul.f32 %v1333, %v254
    %v1372 = vmul.f32 %v1334, %v255
    %v1373 = vmul.f32 %v1335, %v256
    %v1374 = vmul.f32 %v1336, %v257
    %v1375 = vmul.f32 %v1337, %v258
    %v1376 = vmul.f32 %v1338, %v259
    %v1377 = vmul.f32 %v1339, %v260
    %v1378 = vadd.f32 %v1340, %v1341
    %v1379 = vadd.f32 %v1378, %v1342
    %v1380 = vadd.f32 %v1379, %v1343
    %v1381 = vadd.f32 %v1380, %v1344
    %v1382 = vadd.f32 %v1381, %v1345
    %v1383 = vadd.f32 %v1382, %v1346
    %v1384 = vadd.f32 %v1383, %v1347
    %v1385 = vadd.f32 %v1384, %v1348
    %v1386 = vadd.f32 %v1385, %v1349
    %v1387 = vadd.f32 %v1386, %v1350
    %v1388 = vadd.f32 %v1387, %v1351
    %v1389 = vadd.f32 %v1388, %v1352
    %v1390 = vadd.f32 %v1389, %v1353
    %v1391 = vadd.f32 %v1390, %v1354
    %v1392 = vadd.f32 %v1391, %v1355
    %v1393 = vadd.f32 %v1392, %v1356
    %v1394 = vadd.f32 %v1393, %v1357
    %v1395 = vadd.f32 %v1394, %v1358
    %v1396 = vadd.f32 %v1395, %v1359
    %v1397 = vadd.f32 %v1396, %v1360
    %v1398 = vadd.f32 %v1397, %v1361
    %v1399 = vadd.f32 %v1398, %v1362
    %v1400 = vadd.f32 %v1399, %v1363
    %v1401 = vadd.f32 %v1400, %v1364
    %v1402 = vadd.f32 %v1401, %v1365
    %v1403 = vadd.f32 %v1402, %v1366
    %v1404 = vadd.f32 %v1403, %v1367
    %v1405 = vadd.f32 %v1404, %v1368
    %v1406 = vadd.f32 %v1405, %v1369
    %v1407 = vadd.f32 %v1406, %v1370
    %v1408 = vadd.f32 %v1407, %v1371
    %v1409 = vadd.f32 %v1408, %v1372
    %v1410 = vadd.f32 %v1409, %v1373
    %v1411 = vadd.f32 %v1410, %v1374
    %v1412 = vadd.f32 %v1411, %v1375
    %v1413 = vadd.f32 %v1412, %v1376
    %v1414 = vadd.f32 %v1413, %v1377
    %v1415 = vrot.slane %v1414, 4
    %v1416 = vadd.f32 %v1414, %v1415
    %v1417 = vrot.slane %v1416, 2
    %v1418 = vadd.f32 %v1416, %v1417
    %v1419 = vrot.slane %v1418, 1
    %v1420 = vadd.f32 %v1418, %v1419
    %v1421 = vmul.f32 %v1340, %v1340
    %v1422 = vmul.f32 %v1341, %v1341
    %v1423 = vmul.f32 %v1342, %v1342
    %v1424 = vmul.f32 %v1343, %v1343
    %v1425 = vmul.f32 %v1344, %v1344
    %v1426 = vmul.f32 %v1345, %v1345
    %v1427 = vmul.f32 %v1346, %v1346
    %v1428 = vmul.f32 %v1347, %v1347
    %v1429 = vmul.f32 %v1348, %v1348
    %v1430 = vmul.f32 %v1349, %v1349
    %v1431 = vmul.f32 %v1350, %v1350
    %v1432 = vmul.f32 %v1351, %v1351
    %v1433 = vmul.f32 %v1352, %v1352
    %v1434 = vmul.f32 %v1353, %v1353
    %v1435 = vmul.f32 %v1354, %v1354
    %v1436 = vmul.f32 %v1355, %v1355
    %v1437 = vmul.f32 %v1356, %v1356
    %v1438 = vmul.f32 %v1357, %v1357
    %v1439 = vmul.f32 %v1358, %v1358
    %v1440 = vmul.f32 %v1359, %v1359
    %v1441 = vmul.f32 %v1360, %v1360
    %v1442 = vmul.f32 %v1361, %v1361
    %v1443 = vmul.f32 %v1362, %v1362
    %v1444 = vmul.f32 %v1363, %v1363
    %v1445 = vmul.f32 %v1364, %v1364
    %v1446 = vmul.f32 %v1365, %v1365
    %v1447 = vmul.f32 %v1366, %v1366
    %v1448 = vmul.f32 %v1367, %v1367
    %v1449 = vmul.f32 %v1368, %v1368
    %v1450 = vmul.f32 %v1369, %v1369
    %v1451 = vmul.f32 %v1370, %v1370
    %v1452 = vmul.f32 %v1371, %v1371
    %v1453 = vmul.f32 %v1372, %v1372
    %v1454 = vmul.f32 %v1373, %v1373
    %v1455 = vmul.f32 %v1374, %v1374
    %v1456 = vmul.f32 %v1375, %v1375
    %v1457 = vmul.f32 %v1376, %v1376
    %v1458 = vmul.f32 %v1377, %v1377
    %v1459 = vadd.f32 %v1421, %v1422
    %v1460 = vadd.f32 %v1459, %v1423
    %v1461 = vadd.f32 %v1460, %v1424
    %v1462 = vadd.f32 %v1461, %v1425
    %v1463 = vadd.f32 %v1462, %v1426
    %v1464 = vadd.f32 %v1463, %v1427
    %v1465 = vadd.f32 %v1464, %v1428
    %v1466 = vadd.f32 %v1465, %v1429
    %v1467 = vadd.f32 %v1466, %v1430
    %v1468 = vadd.f32 %v1467, %v1431
    %v1469 = vadd.f32 %v1468, %v1432
    %v1470 = vadd.f32 %v1469, %v1433
    %v1471 = vadd.f32 %v1470, %v1434
    %v1472 = vadd.f32 %v1471, %v1435
    %v1473 = vadd.f32 %v1472, %v1436
    %v1474 = vadd.f32 %v1473, %v1437
    %v1475 = vadd.f32 %v1474, %v1438
    %v1476 = vadd.f32 %v1475, %v1439
    %v1477 = vadd.f32 %v1476, %v1440
    %v1478 = vadd.f32 %v1477, %v1441
    %v1479 = vadd.f32 %v1478, %v1442
    %v1480 = vadd.f32 %v1479, %v1443
    %v1481 = vadd.f32 %v1480, %v1444
    %v1482 = vadd.f32 %v1481, %v1445
    %v1483 = vadd.f32 %v1482, %v1446
    %v1484 = vadd.f32 %v1483, %v1447
    %v1485 = vadd.f32 %v1484, %v1448
    %v1486 = vadd.f32 %v1485, %v1449
    %v1487 = vadd.f32 %v1486, %v1450
    %v1488 = vadd.f32 %v1487, %v1451
    %v1489 = vadd.f32 %v1488, %v1452
    %v1490 = vadd.f32 %v1489, %v1453
    %v1491 = vadd.f32 %v1490, %v1454
    %v1492 = vadd.f32 %v1491, %v1455
    %v1493 = vadd.f32 %v1492, %v1456
    %v1494 = vadd.f32 %v1493, %v1457
    %v1495 = vadd.f32 %v1494, %v1458
    %v1496 = vrot.slane %v1495, 4
    %v1497 = vadd.f32 %v1495, %v1496
    %v1498 = vrot.slane %v1497, 2
    %v1499 = vadd.f32 %v1497, %v1498
    %v1500 = vrot.slane %v1499, 1
    %v1501 = vadd.f32 %v1499, %v1500
    %v1502 = vmul.f32 %v1420, 0.0033333334
    %v1503 = vmul.f32 %v1501, 0.0033333334
    %v1504 = vmul.f32 %v1502, %v1502
    %v1505 = vsub.f32 %v1503, %v1504
    %v1506 = vmax.f32 %v1505, 0.0
    %v1507 = vadd.f32 %v1506, 1e-05
    %v1508 = vrsqrt.pop %v1507
    %v1509 = vmul.f32 %v106, %v1508
    %v1510 = vmul.f32 %v1502, %v1509
    %v1512 = vrot.slane %v1510, 7
    %v1514 = vsub.f32 %v106, %v1512
    %v1515 = vld [vmem:[#allocation2] sm:$0x7]
    %v1516 = vlaneseq
    %v1517 = vshrl.u32 %v1516, 7
    %v1518 = vsub.s32 0, %v1517
    %v1519 = vrot.slane %v1515, %v1518
    %v1520 = vlaneseq
    %v1521 = vshrl.u32 %v1520, 7
    %v1522 = vsub.s32 1, %v1521
    %v1523 = vrot.slane %v1515, %v1522
    %v1524 = vlaneseq
    %v1525 = vshrl.u32 %v1524, 7
    %v1526 = vsub.s32 2, %v1525
    %v1527 = vrot.slane %v1515, %v1526
    %vm1528 = vcmp.eq.s32.totalorder %v1519, %v109
    %vm1529 = vcmp.eq.s32.totalorder %v1523, %v109
    %vm1530 = vcmp.eq.s32.totalorder %v1527, %v109
    %vm1531 = vcmp.eq.s32.totalorder %v1519, %v110
    %vm1532 = vcmp.eq.s32.totalorder %v1523, %v110
    %vm1533 = vcmp.eq.s32.totalorder %v1527, %v110
    %vm1534 = vcmp.eq.s32.totalorder %v1519, %v111
    %vm1535 = vcmp.eq.s32.totalorder %v1523, %v111
    %vm1536 = vcmp.eq.s32.totalorder %v1527, %v111
    %vm1537 = vcmp.eq.s32.totalorder %v1519, %v112
    %vm1538 = vcmp.eq.s32.totalorder %v1523, %v112
    %vm1539 = vcmp.eq.s32.totalorder %v1527, %v112
    %vm1540 = vcmp.eq.s32.totalorder %v1519, %v113
    %vm1541 = vcmp.eq.s32.totalorder %v1523, %v113
    %vm1542 = vcmp.eq.s32.totalorder %v1527, %v113
    %v1543 = vsel %vm1528, 1, 0
    %v1544 = vsel %vm1529, 1, 0
    %v1545 = vsel %vm1530, 1, 0
    %v1546 = vsel %vm1531, 1, 0
    %v1547 = vsel %vm1532, 1, 0
    %v1548 = vsel %vm1533, 1, 0
    %v1549 = vsel %vm1534, 1, 0
    %v1550 = vsel %vm1535, 1, 0
    %v1551 = vsel %vm1536, 1, 0
    %v1552 = vsel %vm1537, 1, 0
    %v1553 = vsel %vm1538, 1, 0
    %v1554 = vsel %vm1539, 1, 0
    %v1555 = vsel %vm1540, 1, 0
    %v1556 = vsel %vm1541, 1, 0
    %v1557 = vsel %vm1542, 1, 0
    %v1558 = vcvt.s32.f32 %v1543
    %v1559 = vcvt.s32.f32 %v1544
    %v1560 = vcvt.s32.f32 %v1545
    %v1561 = vcvt.s32.f32 %v1546
    %v1562 = vcvt.s32.f32 %v1547
    %v1563 = vcvt.s32.f32 %v1548
    %v1564 = vcvt.s32.f32 %v1549
    %v1565 = vcvt.s32.f32 %v1550
    %v1566 = vcvt.s32.f32 %v1551
    %v1567 = vcvt.s32.f32 %v1552
    %v1568 = vcvt.s32.f32 %v1553
    %v1569 = vcvt.s32.f32 %v1554
    %v1570 = vcvt.s32.f32 %v1555
    %v1571 = vcvt.s32.f32 %v1556
    %v1572 = vcvt.s32.f32 %v1557
    %v1573 = vpack.c.bf16 %v1561, %v1558
    %v1574 = vpack.c.bf16 %v1562, %v1559
    %v1575 = vpack.c.bf16 %v1563, %v1560
    %v1576 = vpack.c.bf16 %v1567, %v1564
    %v1577 = vpack.c.bf16 %v1568, %v1565
    %v1578 = vpack.c.bf16 %v1569, %v1566
    %v1579 = vpack.c.bf16 %v1570, %v1570
    %v1580 = vpack.c.bf16 %v1571, %v1571
    %v1581 = vpack.c.bf16 %v1572, %v1572
    %v1582 = vpack.c.bf16 %v1303, %v1302
    %v1583 = vpack.c.bf16 %v1305, %v1304
    %v1584 = vpack.c.bf16 %v1307, %v1306
    %v1585 = vpack.c.bf16 %v1309, %v1308
    %v1586 = vpack.c.bf16 %v1311, %v1310
    %v1587 = vpack.c.bf16 %v1313, %v1312
    %v1588 = vpack.c.bf16 %v1315, %v1314
    %v1589 = vpack.c.bf16 %v1317, %v1316
    %v1590 = vpack.c.bf16 %v1319, %v1318
    %v1591 = vpack.c.bf16 %v1321, %v1320
    %v1592 = vpack.c.bf16 %v1323, %v1322
    %v1593 = vpack.c.bf16 %v1325, %v1324
    %v1594 = vpack.c.bf16 %v1327, %v1326
    %v1595 = vpack.c.bf16 %v1329, %v1328
    %v1596 = vpack.c.bf16 %v1331, %v1330
    %v1597 = vpack.c.bf16 %v1333, %v1332
    %v1598 = vpack.c.bf16 %v1335, %v1334
    %v1599 = vpack.c.bf16 %v1337, %v1336
    %v1600 = vpack.c.bf16 %v1339, %v1338
    %vm1601 = vcmask 392192
    %v1603 = vsel %vm1601, %v1575, 0
    %v1606 = vsel %vm1601, %v1578, 0
    %v1609 = vsel %vm1601, %v1581, 0
    %1611 = vmatprep.subr.bf16.mxu0 0
    %1612 = vmatpush1.bf16.msra.mxu0 %v1582
    %1613 = vmatprep.subr.bf16.mxu0 0
    %1614 = vmatpush1.bf16.msra.mxu0 %v1583
    %1615 = vmatprep.subr.bf16.mxu0 0
    %1616 = vmatpush1.bf16.msra.mxu0 %v1584
    %1617 = vmatprep.subr.bf16.mxu0 0
    %1618 = vmatpush1.bf16.msra.mxu0 %v1585
    %1619 = vmatprep.subr.bf16.mxu0 0
    %1620 = vmatpush1.bf16.msra.mxu0 %v1586
    %1621 = vmatprep.subr.bf16.mxu0 0
    %1622 = vmatpush1.bf16.msra.mxu0 %v1587
    %1623 = vmatprep.subr.bf16.mxu0 0
    %1624 = vmatpush1.bf16.msra.mxu0 %v1588
    %1625 = vmatprep.subr.bf16.mxu0 0
    %1626 = vmatpush1.bf16.msra.mxu0 %v1589
    %1627 = vmatprep.subr.bf16.mxu0 0
    %1628 = vmatpush1.bf16.msra.mxu0 %v1590
    %1629 = vmatprep.subr.bf16.mxu0 0
    %1630 = vmatpush1.bf16.msra.mxu0 %v1591
    %1631 = vmatprep.subr.bf16.mxu0 0
    %1632 = vmatpush1.bf16.msra.mxu0 %v1592
    %1633 = vmatprep.subr.bf16.mxu0 0
    %1634 = vmatpush1.bf16.msra.mxu0 %v1593
    %1635 = vmatprep.subr.bf16.mxu0 0
    %1636 = vmatpush1.bf16.msra.mxu0 %v1594
    %1637 = vmatprep.subr.bf16.mxu0 0
    %1638 = vmatpush1.bf16.msra.mxu0 %v1595
    %1639 = vmatprep.subr.bf16.mxu0 0
    %1640 = vmatpush1.bf16.msra.mxu0 %v1596
    %1641 = vmatprep.subr.bf16.mxu0 0
    %1642 = vmatpush1.bf16.msra.mxu0 %v1597
    %1643 = vmatprep.mubr.bf16.mxu0 %v1574
    %1644 = vmatmul.mubr.bf16.gmra.mrb[0].mxu0 %v1573
    %v1645 = vpop.f32.mrb[0].mxu0
    %v1646 = vadd.f32 0.0, %v1645
    %v1647 = vpop.f32.mrb[0].mxu0
    %v1648 = vpop.f32.mrb[0].mxu0
    %v1649 = vadd.f32 0.0, %v1648
    %v1650 = vpop.f32.mrb[0].mxu0
    %1651 = vmatprep.mubr.bf16.mxu0 %v1577
    %1652 = vmatmul.mubr.bf16.gmra.mrb[0].mxu0 %v1576
    %v1653 = vpop.f32.mrb[0].mxu0
    %v1654 = vadd.f32 0.0, %v1653
    %v1655 = vpop.f32.mrb[0].mxu0
    %v1656 = vpop.f32.mrb[0].mxu0
    %v1657 = vadd.f32 0.0, %v1656
    %v1658 = vpop.f32.mrb[0].mxu0
    %1659 = vmatprep.mubr.bf16.mxu0 %v1580
    %1660 = vmatmul.mubr.bf16.gmra.mrb[0].mxu0 %v1579
    %v1661 = vpop.f32.mrb[0].mxu0
    %v1662 = vadd.f32 0.0, %v1661
    %v1663 = vpop.f32.mrb[0].mxu0
    %v1664 = vpop.f32.mrb[0].mxu0
    %v1665 = vpop.f32.mrb[0].mxu0
    %1666 = vdwg.mxu0
    %1667 = vmatprep.subr.bf16.mxu0 0
    %1668 = vmatpush1.bf16.msra.mxu0 %v1598
    %1669 = vmatprep.subr.bf16.mxu0 0
    %1670 = vmatpush1.bf16.msra.mxu0 %v1599
    %1671 = vmatprep.subr.bf16.mxu0 0
    %1672 = vmatpush1.bf16.msra.mxu0 %v1600
    %1673 = vmatprep.subr.bf16.mxu0 0
    %1674 = vmatpush1.bf16.msra.mxu0 0
    %1675 = vmatprep.subr.bf16.mxu0 0
    %1676 = vmatpush1.bf16.msra.mxu0 0
    %1677 = vmatprep.subr.bf16.mxu0 0
    %1678 = vmatpush1.bf16.msra.mxu0 0
    %1679 = vmatprep.subr.bf16.mxu0 0
    %1680 = vmatpush1.bf16.msra.mxu0 0
    %1681 = vmatprep.subr.bf16.mxu0 0
    %1682 = vmatpush1.bf16.msra.mxu0 0
    %1683 = vmatprep.subr.bf16.mxu0 0
    %1684 = vmatpush1.bf16.msra.mxu0 0
    %1685 = vmatprep.subr.bf16.mxu0 0
    %1686 = vmatpush1.bf16.msra.mxu0 0
    %1687 = vmatprep.subr.bf16.mxu0 0
    %1688 = vmatpush1.bf16.msra.mxu0 0
    %1689 = vmatprep.subr.bf16.mxu0 0
    %1690 = vmatpush1.bf16.msra.mxu0 0
    %1691 = vmatprep.subr.bf16.mxu0 0
    %1692 = vmatpush1.bf16.msra.mxu0 0
    %1693 = vmatprep.subr.bf16.mxu0 0
    %1694 = vmatpush1.bf16.msra.mxu0 0
    %1695 = vmatprep.subr.bf16.mxu0 0
    %1696 = vmatpush1.bf16.msra.mxu0 0
    %1697 = vmatprep.subr.bf16.mxu0 0
    %1698 = vmatpush1.bf16.msra.mxu0 0
    %1699 = vmatprep.mubr.bf16.mxu0 0
    %1700 = vmatmul.mubr.bf16.gmra.mrb[0].mxu0 %v1603
    %v1701 = vpop.f32.mrb[0].mxu0
    %v1702 = vadd.f32 %v1646, %v1701
    %v1703 = vpop.f32.mrb[0].mxu0
    %v1704 = vpop.f32.mrb[0].mxu0
    %v1705 = vadd.f32 %v1649, %v1704
    %v1706 = vpop.f32.mrb[0].mxu0
    %1707 = vmatprep.mubr.bf16.mxu0 0
    %1708 = vmatmul.mubr.bf16.gmra.mrb[0].mxu0 %v1606
    %v1709 = vpop.f32.mrb[0].mxu0
    %v1710 = vadd.f32 %v1654, %v1709
    %v1711 = vpop.f32.mrb[0].mxu0
    %v1712 = vpop.f32.mrb[0].mxu0
    %v1713 = vadd.f32 %v1657, %v1712
    %v1714 = vpop.f32.mrb[0].mxu0
    %1715 = vmatprep.mubr.bf16.mxu0 0
    %1716 = vmatmul.mubr.bf16.gmra.mrb[0].mxu0 %v1609
    %v1717 = vpop.f32.mrb[0].mxu0
    %v1718 = vadd.f32 %v1662, %v1717
    %v1719 = vpop.f32.mrb[0].mxu0
    %v1720 = vpop.f32.mrb[0].mxu0
    %v1721 = vpop.f32.mrb[0].mxu0
    %1722 = vdwg.mxu0
    %v1723 = vadd.f32 %v1558, %v1559
    %v1724 = vsel %vm1601, %v1560, 0.0
    %v1725 = vadd.f32 %v1723, %v1724
    %1726 = vadd.xlane.f32.xlu0 %v1725
    %v1727 = vpop.xlane.xlu0 %1726
    %v1728 = vadd.f32 %v1561, %v1562
    %v1729 = vsel %vm1601, %v1563, 0.0
    %v1730 = vadd.f32 %v1728, %v1729
    %1731 = vadd.xlane.f32.xlu0 %v1730
    %v1732 = vpop.xlane.xlu0 %1731
    %v1733 = vadd.f32 %v1564, %v1565
    %v1734 = vsel %vm1601, %v1566, 0.0
    %v1735 = vadd.f32 %v1733, %v1734
    %1736 = vadd.xlane.f32.xlu0 %v1735
    %v1737 = vpop.xlane.xlu0 %1736
    %v1738 = vadd.f32 %v1567, %v1568
    %v1739 = vsel %vm1601, %v1569, 0.0
    %v1740 = vadd.f32 %v1738, %v1739
    %1741 = vadd.xlane.f32.xlu0 %v1740
    %v1742 = vpop.xlane.xlu0 %1741
    %v1743 = vadd.f32 %v1570, %v1571
    %v1744 = vsel %vm1601, %v1572, 0.0
    %v1745 = vadd.f32 %v1743, %v1744
    %1746 = vadd.xlane.f32.xlu0 %v1745
    %v1747 = vpop.xlane.xlu0 %1746
    %v1748 = vld [vmem:[%s5] sm:$0xf]
    %v1749 = vld [vmem:[%s5 + $0x4] sm:$0xf]
    %v1750 = vld [vmem:[%s5 + $0x8] sm:$0xf]
    %v1751 = vld [vmem:[%s5 + $0xc] sm:$0xf]
    %v1752 = vld [vmem:[%s5 + $0x10] sm:$0xf]
    %v1753 = vld [vmem:[%s5 + $0x14] sm:$0xf]
    %v1754 = vld [vmem:[%s5 + $0x18] sm:$0xf]
    %v1755 = vld [vmem:[%s5 + $0x1c] sm:$0xf]
    %v1756 = vld [vmem:[%s5 + $0x20] sm:$0xf]
    %v1757 = vld [vmem:[%s5 + $0x24] sm:$0xf]
    %v1758 = vld [vmem:[%s5 + $0x28] sm:$0xf]
    %v1759 = vld [vmem:[%s5 + $0x2c] sm:$0xf]
    %v1760 = vld [vmem:[%s5 + $0x30] sm:$0xf]
    %v1761 = vld [vmem:[%s5 + $0x34] sm:$0xf]
    %v1762 = vld [vmem:[%s5 + $0x38] sm:$0xf]
    %v1763 = vld [vmem:[%s5 + $0x3c] sm:$0xf]
    %v1764 = vpack.c.bf16 %v1514, %v1514
    %v1766 = vshrl.u32 %v1764, 16
    %v1768 = vrot.slane %v1766, 2
    %v1786 = vunpack.c.l.b16 %v1748
    %v1787 = vunpack.c.l.b16 %v1749
    %v1788 = vunpack.c.l.b16 %v1750
    %v1789 = vunpack.c.l.b16 %v1751
    %v1790 = vunpack.c.l.b16 %v1752
    %v1791 = vunpack.c.l.b16 %v1753
    %v1792 = vunpack.c.l.b16 %v1754
    %v1793 = vunpack.c.l.b16 %v1755
    %v1794 = vunpack.c.l.b16 %v1756
    %v1795 = vunpack.c.l.b16 %v1757
    %v1796 = vunpack.c.l.b16 %v1758
    %v1797 = vunpack.c.l.b16 %v1759
    %v1798 = vunpack.c.l.b16 %v1760
    %v1799 = vunpack.c.l.b16 %v1761
    %v1800 = vunpack.c.l.b16 %v1762
    %v1801 = vunpack.c.l.b16 %v1763
    %v1802 = vpack.c.b16 %v1787, %v1786
    %v1803 = vpack.c.b16 %v1789, %v1788
    %v1804 = vpack.c.b16 %v1791, %v1790
    %v1805 = vpack.c.b16 %v1793, %v1792
    %v1806 = vpack.c.b16 %v1795, %v1794
    %v1807 = vpack.c.b16 %v1797, %v1796
    %v1808 = vpack.c.b16 %v1799, %v1798
    %v1809 = vpack.c.b16 %v1801, %v1800
    %v1819 = vrot.slane %v106, 6
    %1821 = vmatprep.subr.bf16.mxu0 0
    %1822 = vmatpush1.bf16.msra.mxu0 %v1802
    %1823 = vmatprep.subr.bf16.mxu0 0
    %1824 = vmatpush1.bf16.msra.mxu0 %v1803
    %1825 = vmatprep.subr.bf16.mxu0 0
    %1826 = vmatpush1.bf16.msra.mxu0 %v1804
    %1827 = vmatprep.subr.bf16.mxu0 0
    %1828 = vmatpush1.bf16.msra.mxu0 %v1805
    %1829 = vmatprep.subr.bf16.mxu0 0
    %1830 = vmatpush1.bf16.msra.mxu0 %v1806
    %1831 = vmatprep.subr.bf16.mxu0 0
    %1832 = vmatpush1.bf16.msra.mxu0 %v1807
    %1833 = vmatprep.subr.bf16.mxu0 0
    %1834 = vmatpush1.bf16.msra.mxu0 %v1808
    %1835 = vmatprep.subr.bf16.mxu0 0
    %1836 = vmatpush1.bf16.msra.mxu0 %v1809
    %1837 = vmatprep.subr.bf16.mxu0 0
    %1838 = vmatpush1.bf16.msra.mxu0 0
    %1839 = vmatprep.subr.bf16.mxu0 0
    %1840 = vmatpush1.bf16.msra.mxu0 0
    %1841 = vmatprep.subr.bf16.mxu0 0
    %1842 = vmatpush1.bf16.msra.mxu0 0
    %1843 = vmatprep.subr.bf16.mxu0 0
    %1844 = vmatpush1.bf16.msra.mxu0 0
    %1845 = vmatprep.subr.bf16.mxu0 0
    %1846 = vmatpush1.bf16.msra.mxu0 0
    %1847 = vmatprep.subr.bf16.mxu0 0
    %1848 = vmatpush1.bf16.msra.mxu0 0
    %1849 = vmatprep.subr.bf16.mxu0 0
    %1850 = vmatpush1.bf16.msra.mxu0 0
    %1851 = vmatprep.subr.bf16.mxu0 0
    %1852 = vmatpush1.bf16.msra.mxu0 0
    %1853 = vmatprep.mubr.bf16.mxu0 0
    %1854 = vmatmul.mubr.bf16.gmra.mrb[0].mxu0 %v1768
    %v1855 = vpop.f32.mrb[0].mxu0
    %v1856 = vadd.f32 %v1819, %v1855
    %v1857 = vpop.f32.mrb[0].mxu0
    %v1858 = vpop.f32.mrb[0].mxu0
    %v1859 = vpop.f32.mrb[0].mxu0
    %1860 = vdwg.mxu0
    %v1861 = vlaneseq
    %v1862 = vshrl.u32 %v1861, 7
    %v1863 = vsub.s32 4, %v1862
    %v1864 = vrot.slane %v1509, %v1863
    %v1865 = vmul.f32 %v1702, %v1864
    %v1866 = vmul.f32 %v1705, %v1864
    %v1867 = vmul.f32 %v1710, %v1864
    %v1868 = vmul.f32 %v1713, %v1864
    %v1869 = vmul.f32 %v1718, %v1864
    %v1870 = vpack.c.bf16 %v1866, %v1865
    %v1871 = vpack.c.bf16 %v1868, %v1867
    %v1872 = vpack.c.bf16 %v1869, %v1869
    %v1873 = vlaneseq
    %v1874 = vshrl.u32 %v1873, 7
    %v1875 = vsub.s32 0, %v1874
    %v1876 = vrot.slane %v1856, %v1875
    %v1877 = vmul.f32 %v1727, %v1876
    %v1878 = vmul.f32 %v1732, %v1876
    %v1879 = vmul.f32 %v1737, %v1876
    %v1880 = vmul.f32 %v1742, %v1876
    %v1881 = vmul.f32 %v1747, %v1876
    %1882 = vmatprep.subr.bf16.mxu0 0
    %1883 = vmatpush1.bf16.msra.mxu0 %v1802
    %1884 = vmatprep.subr.bf16.mxu0 0
    %1885 = vmatpush1.bf16.msra.mxu0 %v1803
    %1886 = vmatprep.subr.bf16.mxu0 0
    %1887 = vmatpush1.bf16.msra.mxu0 %v1804
    %1888 = vmatprep.subr.bf16.mxu0 0
    %1889 = vmatpush1.bf16.msra.mxu0 %v1805
    %1890 = vmatprep.subr.bf16.mxu0 0
    %1891 = vmatpush1.bf16.msra.mxu0 %v1806
    %1892 = vmatprep.subr.bf16.mxu0 0
    %1893 = vmatpush1.bf16.msra.mxu0 %v1807
    %1894 = vmatprep.subr.bf16.mxu0 0
    %1895 = vmatpush1.bf16.msra.mxu0 %v1808
    %1896 = vmatprep.subr.bf16.mxu0 0
    %1897 = vmatpush1.bf16.msra.mxu0 %v1809
    %1898 = vmatprep.subr.bf16.mxu0 0
    %1899 = vmatpush1.bf16.msra.mxu0 0
    %1900 = vmatprep.subr.bf16.mxu0 0
    %1901 = vmatpush1.bf16.msra.mxu0 0
    %1902 = vmatprep.subr.bf16.mxu0 0
    %1903 = vmatpush1.bf16.msra.mxu0 0
    %1904 = vmatprep.subr.bf16.mxu0 0
    %1905 = vmatpush1.bf16.msra.mxu0 0
    %1906 = vmatprep.subr.bf16.mxu0 0
    %1907 = vmatpush1.bf16.msra.mxu0 0
    %1908 = vmatprep.subr.bf16.mxu0 0
    %1909 = vmatpush1.bf16.msra.mxu0 0
    %1910 = vmatprep.subr.bf16.mxu0 0
    %1911 = vmatpush1.bf16.msra.mxu0 0
    %1912 = vmatprep.subr.bf16.mxu0 0
    %1913 = vmatpush1.bf16.msra.mxu0 0
    %1914 = vmatprep.mubr.bf16.mxu0 0
    %1915 = vmatmul.mubr.bf16.gmra.mrb[0].mxu0 %v1870
    %v1916 = vpop.f32.mrb[0].mxu0
    %v1917 = vadd.f32 %v1877, %v1916
    %v1918 = vpop.f32.mrb[0].mxu0
    %v1919 = vpop.f32.mrb[0].mxu0
    %v1920 = vadd.f32 %v1878, %v1919
    %v1921 = vpop.f32.mrb[0].mxu0
    %1922 = vmatprep.mubr.bf16.mxu0 0
    %1923 = vmatmul.mubr.bf16.gmra.mrb[0].mxu0 %v1871
    %v1924 = vpop.f32.mrb[0].mxu0
    %v1925 = vadd.f32 %v1879, %v1924
    %v1926 = vpop.f32.mrb[0].mxu0
    %v1927 = vpop.f32.mrb[0].mxu0
    %v1928 = vadd.f32 %v1880, %v1927
    %v1929 = vpop.f32.mrb[0].mxu0
    %1930 = vmatprep.mubr.bf16.mxu0 0
    %1931 = vmatmul.mubr.bf16.gmra.mrb[0].mxu0 %v1872
    %v1932 = vpop.f32.mrb[0].mxu0
    %v1933 = vadd.f32 %v1881, %v1932
    %v1934 = vpop.f32.mrb[0].mxu0
    %v1935 = vpop.f32.mrb[0].mxu0
    %v1936 = vpop.f32.mrb[0].mxu0
    %1937 = vdwg.mxu0
    %v1938 = vld [vmem:[%s0] sm:$0xf]
    %v1939 = vld [vmem:[%s0 + $0x4] sm:$0xf]
    %v1940 = vld [vmem:[%s0 + $0x8] sm:$0xf]
    %v1941 = vld [vmem:[%s0 + $0xc] sm:$0xf]
    %v1942 = vld [vmem:[%s0 + $0x10] sm:$0xf]
    %v1943 = vld [vmem:[#allocation7] sm:$0xf]
    %v1944 = vld [vmem:[#allocation7 + $0x4] sm:$0xf]
    %v1945 = vld [vmem:[%s7] sm:$0xf]
    %v1946 = vld [vmem:[%s7 + $0x4] sm:$0xf]
    %v1947 = vld [vmem:[%s7 + $0x8] sm:$0xf]
    %v1948 = vld [vmem:[%s7 + $0xc] sm:$0xf]
    %v1949 = vld [vmem:[%s7 + $0x10] sm:$0xf]
    %v1950 = vld [vmem:[%s7 + $0x14] sm:$0xf]
    %v1951 = vld [vmem:[%s7 + $0x18] sm:$0xf]
    %v1952 = vld [vmem:[%s7 + $0x1c] sm:$0xf]
    %v1953 = vld [vmem:[%s7 + $0x20] sm:$0xf]
    %v1954 = vld [vmem:[%s7 + $0x24] sm:$0xf]
    %v1955 = vld [vmem:[%s7 + $0x28] sm:$0xf]
    %v1956 = vld [vmem:[%s7 + $0x2c] sm:$0xf]
    %v1957 = vld [vmem:[%s7 + $0x30] sm:$0xf]
    %v1958 = vld [vmem:[%s7 + $0x34] sm:$0xf]
    %v1959 = vld [vmem:[%s7 + $0x38] sm:$0xf]
    %v1960 = vld [vmem:[%s7 + $0x3c] sm:$0xf]
    %v1961 = vld [vmem:[%s8] sm:$0xf]
    %v1962 = vld [vmem:[%s8 + $0x4] sm:$0xf]
    %v1963 = vld [vmem:[%s8 + $0x8] sm:$0xf]
    %v1964 = vld [vmem:[%s8 + $0xc] sm:$0xf]
    %v1965 = vld [vmem:[%s8 + $0x10] sm:$0xf]
    %v1966 = vld [vmem:[%s8 + $0x14] sm:$0xf]
    %v1967 = vld [vmem:[%s8 + $0x18] sm:$0xf]
    %v1968 = vld [vmem:[%s8 + $0x1c] sm:$0xf]
    %v1969 = vld [vmem:[%s8 + $0x20] sm:$0xf]
    %v1970 = vld [vmem:[%s8 + $0x24] sm:$0xf]
    %v1971 = vld [vmem:[%s8 + $0x28] sm:$0xf]
    %v1972 = vld [vmem:[%s8 + $0x2c] sm:$0xf]
    %v1973 = vld [vmem:[%s8 + $0x30] sm:$0xf]
    %v1974 = vld [vmem:[%s8 + $0x34] sm:$0xf]
    %v1975 = vld [vmem:[%s8 + $0x38] sm:$0xf]
    %v1976 = vld [vmem:[%s8 + $0x3c] sm:$0xf]
    %v1977 = vld [vmem:[#allocation8] sm:$0xf]
    %v1978 = vld [vmem:[#allocation8 + $0x4] sm:$0xf]
    %v1979 = vld [vmem:[#allocation8 + $0x8] sm:$0xf]
    %v1980 = vld [vmem:[#allocation8 + $0xc] sm:$0xf]
    %v1981 = vld [vmem:[#allocation8 + $0x10] sm:$0xf]
    %v1982 = vld [vmem:[#allocation8 + $0x14] sm:$0xf]
    %v1983 = vld [vmem:[#allocation8 + $0x18] sm:$0xf]
    %v1984 = vld [vmem:[#allocation8 + $0x1c] sm:$0xf]
    %v1985 = vld [vmem:[#allocation8 + $0x20] sm:$0xf]
    %v1986 = vld [vmem:[#allocation8 + $0x24] sm:$0xf]
    %v1987 = vld [vmem:[#allocation8 + $0x28] sm:$0xf]
    %v1988 = vld [vmem:[#allocation8 + $0x2c] sm:$0xf]
    %v1989 = vld [vmem:[#allocation8 + $0x30] sm:$0xf]
    %v1990 = vld [vmem:[#allocation8 + $0x34] sm:$0xf]
    %v1991 = vld [vmem:[#allocation8 + $0x38] sm:$0xf]
    %v1992 = vld [vmem:[#allocation8 + $0x3c] sm:$0xf]
    %v1993 = vpack.c.bf16 %v1920, %v1917
    %v1994 = vpack.c.bf16 %v1928, %v1925
    %v1995 = vpack.c.bf16 %v1933, %v1933
    %v2012 = vunpack.c.l.b16 %v1945
    %v2013 = vunpack.c.l.b16 %v1946
    %v2014 = vunpack.c.l.b16 %v1947
    %v2015 = vunpack.c.l.b16 %v1948
    %v2016 = vunpack.c.l.b16 %v1949
    %v2017 = vunpack.c.l.b16 %v1950
    %v2018 = vunpack.c.l.b16 %v1951
    %v2019 = vunpack.c.l.b16 %v1952
    %v2020 = vunpack.c.l.b16 %v1953
    %v2021 = vunpack.c.l.b16 %v1954
    %v2022 = vunpack.c.l.b16 %v1955
    %v2023 = vunpack.c.l.b16 %v1956
    %v2024 = vunpack.c.l.b16 %v1957
    %v2025 = vunpack.c.l.b16 %v1958
    %v2026 = vunpack.c.l.b16 %v1959
    %v2027 = vunpack.c.l.b16 %v1960
    %v2028 = vpack.c.b16 %v2013, %v2012
    %v2029 = vpack.c.b16 %v2015, %v2014
    %v2030 = vpack.c.b16 %v2017, %v2016
    %v2031 = vpack.c.b16 %v2019, %v2018
    %v2032 = vpack.c.b16 %v2021, %v2020
    %v2033 = vpack.c.b16 %v2023, %v2022
    %v2034 = vpack.c.b16 %v2025, %v2024
    %v2035 = vpack.c.b16 %v2027, %v2026
    %2044 = vmatprep.subr.bf16.mxu0 0
    %2045 = vmatpush1.bf16.msra.mxu0 %v2028
    %2046 = vmatprep.subr.bf16.mxu0 0
    %2047 = vmatpush1.bf16.msra.mxu0 %v2029
    %2048 = vmatprep.subr.bf16.mxu0 0
    %2049 = vmatpush1.bf16.msra.mxu0 %v2030
    %2050 = vmatprep.subr.bf16.mxu0 0
    %2051 = vmatpush1.bf16.msra.mxu0 %v2031
    %2052 = vmatprep.subr.bf16.mxu0 0
    %2053 = vmatpush1.bf16.msra.mxu0 %v2032
    %2054 = vmatprep.subr.bf16.mxu0 0
    %2055 = vmatpush1.bf16.msra.mxu0 %v2033
    %2056 = vmatprep.subr.bf16.mxu0 0
    %2057 = vmatpush1.bf16.msra.mxu0 %v2034
    %2058 = vmatprep.subr.bf16.mxu0 0
    %2059 = vmatpush1.bf16.msra.mxu0 %v2035
    %2060 = vmatprep.subr.bf16.mxu0 0
    %2061 = vmatpush1.bf16.msra.mxu0 0
    %2062 = vmatprep.subr.bf16.mxu0 0
    %2063 = vmatpush1.bf16.msra.mxu0 0
    %2064 = vmatprep.subr.bf16.mxu0 0
    %2065 = vmatpush1.bf16.msra.mxu0 0
    %2066 = vmatprep.subr.bf16.mxu0 0
    %2067 = vmatpush1.bf16.msra.mxu0 0
    %2068 = vmatprep.subr.bf16.mxu0 0
    %2069 = vmatpush1.bf16.msra.mxu0 0
    %2070 = vmatprep.subr.bf16.mxu0 0
    %2071 = vmatpush1.bf16.msra.mxu0 0
    %2072 = vmatprep.subr.bf16.mxu0 0
    %2073 = vmatpush1.bf16.msra.mxu0 0
    %2074 = vmatprep.subr.bf16.mxu0 0
    %2075 = vmatpush1.bf16.msra.mxu0 0
    %2076 = vmatprep.mubr.bf16.mxu0 0
    %2077 = vmatmul.mubr.bf16.gmra.mrb[0].mxu0 %v1993
    %v2078 = vpop.f32.mrb[0].mxu0
    %v2079 = vadd.f32 0.0, %v2078
    %v2080 = vpop.f32.mrb[0].mxu0
    %v2081 = vpop.f32.mrb[0].mxu0
    %v2082 = vadd.f32 0.0, %v2081
    %v2083 = vpop.f32.mrb[0].mxu0
    %2084 = vmatprep.mubr.bf16.mxu0 0
    %2085 = vmatmul.mubr.bf16.gmra.mrb[0].mxu0 %v1994
    %v2086 = vpop.f32.mrb[0].mxu0
    %v2087 = vadd.f32 0.0, %v2086
    %v2088 = vpop.f32.mrb[0].mxu0
    %v2089 = vpop.f32.mrb[0].mxu0
    %v2090 = vadd.f32 0.0, %v2089
    %v2091 = vpop.f32.mrb[0].mxu0
    %2092 = vmatprep.mubr.bf16.mxu0 0
    %2093 = vmatmul.mubr.bf16.gmra.mrb[0].mxu0 %v1995
    %v2094 = vpop.f32.mrb[0].mxu0
    %v2095 = vadd.f32 0.0, %v2094
    %v2096 = vpop.f32.mrb[0].mxu0
    %v2097 = vpop.f32.mrb[0].mxu0
    %v2098 = vpop.f32.mrb[0].mxu0
    %2099 = vdwg.mxu0
    %v2105 = vunpack.c.l.b16 %v1938
    %v2106 = vunpack.c.l.b16 %v1939
    %v2107 = vunpack.c.l.b16 %v1940
    %v2108 = vunpack.c.l.b16 %v1941
    %v2109 = vunpack.c.l.b16 %v1942
    %v2110 = vpack.c.b16 %v2106, %v2105
    %v2111 = vpack.c.b16 %v2108, %v2107
    %v2112 = vpack.c.b16 %v2109, %v2109
    %v2115 = vunpack.c.l.b16 %v1943
    %v2116 = vunpack.c.l.b16 %v1944
    %v2117 = vpack.c.b16 %v2116, %v2115
    %vm2119 = vcmask 130048
    %v2121 = vsel %vm2119, %v2110, 0
    %v2124 = vsel %vm2119, %v2111, 0
    %v2127 = vsel %vm2119, %v2112, 0
    %2129 = vmatprep.subr.bf16.mxu0 0
    %2130 = vmatpush1.bf16.msra.mxu0 %v2117
    %2131 = vmatprep.subr.bf16.mxu0 0
    %2132 = vmatpush1.bf16.msra.mxu0 0
    %2133 = vmatprep.subr.bf16.mxu0 0
    %2134 = vmatpush1.bf16.msra.mxu0 0
    %2135 = vmatprep.subr.bf16.mxu0 0
    %2136 = vmatpush1.bf16.msra.mxu0 0
    %2137 = vmatprep.subr.bf16.mxu0 0
    %2138 = vmatpush1.bf16.msra.mxu0 0
    %2139 = vmatprep.subr.bf16.mxu0 0
    %2140 = vmatpush1.bf16.msra.mxu0 0
    %2141 = vmatprep.subr.bf16.mxu0 0
    %2142 = vmatpush1.bf16.msra.mxu0 0
    %2143 = vmatprep.subr.bf16.mxu0 0
    %2144 = vmatpush1.bf16.msra.mxu0 0
    %2145 = vmatprep.subr.bf16.mxu0 0
    %2146 = vmatpush1.bf16.msra.mxu0 0
    %2147 = vmatprep.subr.bf16.mxu0 0
    %2148 = vmatpush1.bf16.msra.mxu0 0
    %2149 = vmatprep.subr.bf16.mxu0 0
    %2150 = vmatpush1.bf16.msra.mxu0 0
    %2151 = vmatprep.subr.bf16.mxu0 0
    %2152 = vmatpush1.bf16.msra.mxu0 0
    %2153 = vmatprep.subr.bf16.mxu0 0
    %2154 = vmatpush1.bf16.msra.mxu0 0
    %2155 = vmatprep.subr.bf16.mxu0 0
    %2156 = vmatpush1.bf16.msra.mxu0 0
    %2157 = vmatprep.subr.bf16.mxu0 0
    %2158 = vmatpush1.bf16.msra.mxu0 0
    %2159 = vmatprep.subr.bf16.mxu0 0
    %2160 = vmatpush1.bf16.msra.mxu0 0
    %2161 = vmatprep.mubr.bf16.mxu0 0
    %2162 = vmatmul.mubr.bf16.gmra.mrb[0].mxu0 %v2121
    %v2163 = vpop.f32.mrb[0].mxu0
    %v2164 = vadd.f32 %v2079, %v2163
    %v2165 = vpop.f32.mrb[0].mxu0
    %v2166 = vpop.f32.mrb[0].mxu0
    %v2167 = vadd.f32 %v2082, %v2166
    %v2168 = vpop.f32.mrb[0].mxu0
    %2169 = vmatprep.mubr.bf16.mxu0 0
    %2170 = vmatmul.mubr.bf16.gmra.mrb[0].mxu0 %v2124
    %v2171 = vpop.f32.mrb[0].mxu0
    %v2172 = vadd.f32 %v2087, %v2171
    %v2173 = vpop.f32.mrb[0].mxu0
    %v2174 = vpop.f32.mrb[0].mxu0
    %v2175 = vadd.f32 %v2090, %v2174
    %v2176 = vpop.f32.mrb[0].mxu0
    %2177 = vmatprep.mubr.bf16.mxu0 0
    %2178 = vmatmul.mubr.bf16.gmra.mrb[0].mxu0 %v2127
    %v2179 = vpop.f32.mrb[0].mxu0
    %v2180 = vadd.f32 %v2095, %v2179
    %v2181 = vpop.f32.mrb[0].mxu0
    %v2182 = vpop.f32.mrb[0].mxu0
    %v2183 = vpop.f32.mrb[0].mxu0
    %2184 = vdwg.mxu0
    %v2185 = vlaneseq
    %v2186 = vshrl.u32 %v2185, 7
    %v2187 = vsub.s32 7, %v2186
    %v2188 = vrot.slane %v106, %v2187
    %v2189 = vadd.f32 %v2164, %v2188
    %v2190 = vadd.f32 %v2167, %v2188
    %v2191 = vadd.f32 %v2172, %v2188
    %v2192 = vadd.f32 %v2175, %v2188
    %v2193 = vadd.f32 %v2180, %v2188
    %v2194 = vmul.f32 %v2189, 0.01
    %v2195 = vmul.f32 %v2190, 0.01
    %v2196 = vmul.f32 %v2191, 0.01
    %v2197 = vmul.f32 %v2192, 0.01
    %v2198 = vmul.f32 %v2193, 0.01
    %v2199 = vmax.f32 %v2189, %v2194
    %v2200 = vmax.f32 %v2190, %v2195
    %v2201 = vmax.f32 %v2191, %v2196
    %v2202 = vmax.f32 %v2192, %v2197
    %v2203 = vmax.f32 %v2193, %v2198
    %v2204 = vadd.f32 %v2199, %v2200
    %v2205 = vadd.f32 %v2204, %v2201
    %v2206 = vadd.f32 %v2205, %v2202
    %v2207 = vadd.f32 %v2206, %v2203
    %v2208 = vrot.slane %v2207, 4
    %v2209 = vadd.f32 %v2207, %v2208
    %v2210 = vrot.slane %v2209, 2
    %v2211 = vadd.f32 %v2209, %v2210
    %v2212 = vrot.slane %v2211, 1
    %v2213 = vadd.f32 %v2211, %v2212
    %v2214 = vmul.f32 %v2213, 0.025
    %v2215 = vmul.f32 %v2199, %v2199
    %v2216 = vmul.f32 %v2200, %v2200
    %v2217 = vmul.f32 %v2201, %v2201
    %v2218 = vmul.f32 %v2202, %v2202
    %v2219 = vmul.f32 %v2203, %v2203
    %v2220 = vadd.f32 %v2215, %v2216
    %v2221 = vadd.f32 %v2220, %v2217
    %v2222 = vadd.f32 %v2221, %v2218
    %v2223 = vadd.f32 %v2222, %v2219
    %v2224 = vrot.slane %v2223, 4
    %v2225 = vadd.f32 %v2223, %v2224
    %v2226 = vrot.slane %v2225, 2
    %v2227 = vadd.f32 %v2225, %v2226
    %v2228 = vrot.slane %v2227, 1
    %v2229 = vadd.f32 %v2227, %v2228
    %v2230 = vmul.f32 %v2229, 0.025
    %v2231 = vmul.f32 %v2214, %v2214
    %v2232 = vsub.f32 %v2230, %v2231
    %v2233 = vmax.f32 %v2232, 0.0
    %v2234 = vadd.f32 %v2233, 1e-05
    %v2235 = vrsqrt.pop %v2234
    %v2236 = vmul.f32 %v107, %v2235
    %v2237 = vlaneseq
    %v2238 = vshrl.u32 %v2237, 7
    %v2239 = vsub.s32 0, %v2238
    %v2240 = vrot.slane %v2236, %v2239
    %v2241 = vmul.f32 %v2199, %v2240
    %v2242 = vmul.f32 %v2200, %v2240
    %v2243 = vmul.f32 %v2201, %v2240
    %v2244 = vmul.f32 %v2202, %v2240
    %v2245 = vmul.f32 %v2203, %v2240
    %v2246 = vmul.f32 %v2214, %v2236
    %v2248 = vrot.slane %v2246, 7
    %v2250 = vsub.f32 %v107, %v2248
    %v2251 = vlaneseq
    %v2252 = vshrl.u32 %v2251, 7
    %v2253 = vsub.s32 1, %v2252
    %v2254 = vrot.slane %v2250, %v2253
    %v2255 = vadd.f32 %v2241, %v2254
    %v2256 = vadd.f32 %v2242, %v2254
    %v2257 = vadd.f32 %v2243, %v2254
    %v2258 = vadd.f32 %v2244, %v2254
    %v2259 = vadd.f32 %v2245, %v2254
    %v2260 = vpack.c.bf16 %v2256, %v2255
    %v2261 = vpack.c.bf16 %v2258, %v2257
    %v2262 = vpack.c.bf16 %v2259, %v2259
    %v2263 = vlaneseq
    %v2264 = vshrl.u32 %v2263, 7
    %v2265 = vsub.s32 2, %v2264
    %v2266 = vrot.slane %v107, %v2265
    %v2283 = vunpack.c.l.b16 %v1961
    %v2284 = vunpack.c.l.b16 %v1962
    %v2285 = vunpack.c.l.b16 %v1963
    %v2286 = vunpack.c.l.b16 %v1964
    %v2287 = vunpack.c.l.b16 %v1965
    %v2288 = vunpack.c.l.b16 %v1966
    %v2289 = vunpack.c.l.b16 %v1967
    %v2290 = vunpack.c.l.b16 %v1968
    %v2291 = vunpack.c.l.b16 %v1969
    %v2292 = vunpack.c.l.b16 %v1970
    %v2293 = vunpack.c.l.b16 %v1971
    %v2294 = vunpack.c.l.b16 %v1972
    %v2295 = vunpack.c.l.b16 %v1973
    %v2296 = vunpack.c.l.b16 %v1974
    %v2297 = vunpack.c.l.b16 %v1975
    %v2298 = vunpack.c.l.b16 %v1976
    %v2299 = vpack.c.b16 %v2284, %v2283
    %v2300 = vpack.c.b16 %v2286, %v2285
    %v2301 = vpack.c.b16 %v2288, %v2287
    %v2302 = vpack.c.b16 %v2290, %v2289
    %v2303 = vpack.c.b16 %v2292, %v2291
    %v2304 = vpack.c.b16 %v2294, %v2293
    %v2305 = vpack.c.b16 %v2296, %v2295
    %v2306 = vpack.c.b16 %v2298, %v2297
    %2315 = vmatprep.subr.bf16.mxu0 0
    %2316 = vmatpush1.bf16.msra.mxu0 %v2299
    %2317 = vmatprep.subr.bf16.mxu0 0
    %2318 = vmatpush1.bf16.msra.mxu0 %v2300
    %2319 = vmatprep.subr.bf16.mxu0 0
    %2320 = vmatpush1.bf16.msra.mxu0 %v2301
    %2321 = vmatprep.subr.bf16.mxu0 0
    %2322 = vmatpush1.bf16.msra.mxu0 %v2302
    %2323 = vmatprep.subr.bf16.mxu0 0
    %2324 = vmatpush1.bf16.msra.mxu0 %v2303
    %2325 = vmatprep.subr.bf16.mxu0 0
    %2326 = vmatpush1.bf16.msra.mxu0 %v2304
    %2327 = vmatprep.subr.bf16.mxu0 0
    %2328 = vmatpush1.bf16.msra.mxu0 %v2305
    %2329 = vmatprep.subr.bf16.mxu0 0
    %2330 = vmatpush1.bf16.msra.mxu0 %v2306
    %2331 = vmatprep.subr.bf16.mxu0 0
    %2332 = vmatpush1.bf16.msra.mxu0 0
    %2333 = vmatprep.subr.bf16.mxu0 0
    %2334 = vmatpush1.bf16.msra.mxu0 0
    %2335 = vmatprep.subr.bf16.mxu0 0
    %2336 = vmatpush1.bf16.msra.mxu0 0
    %2337 = vmatprep.subr.bf16.mxu0 0
    %2338 = vmatpush1.bf16.msra.mxu0 0
    %2339 = vmatprep.subr.bf16.mxu0 0
    %2340 = vmatpush1.bf16.msra.mxu0 0
    %2341 = vmatprep.subr.bf16.mxu0 0
    %2342 = vmatpush1.bf16.msra.mxu0 0
    %2343 = vmatprep.subr.bf16.mxu0 0
    %2344 = vmatpush1.bf16.msra.mxu0 0
    %2345 = vmatprep.subr.bf16.mxu0 0
    %2346 = vmatpush1.bf16.msra.mxu0 0
    %2347 = vmatprep.mubr.bf16.mxu0 0
    %2348 = vmatmul.mubr.bf16.gmra.mrb[0].mxu0 %v2260
    %v2349 = vpop.f32.mrb[0].mxu0
    %v2350 = vadd.f32 %v2266, %v2349
    %v2351 = vpop.f32.mrb[0].mxu0
    %v2352 = vpop.f32.mrb[0].mxu0
    %v2353 = vadd.f32 %v2266, %v2352
    %v2354 = vpop.f32.mrb[0].mxu0
    %2355 = vmatprep.mubr.bf16.mxu0 0
    %2356 = vmatmul.mubr.bf16.gmra.mrb[0].mxu0 %v2261
    %v2357 = vpop.f32.mrb[0].mxu0
    %v2358 = vadd.f32 %v2266, %v2357
    %v2359 = vpop.f32.mrb[0].mxu0
    %v2360 = vpop.f32.mrb[0].mxu0
    %v2361 = vadd.f32 %v2266, %v2360
    %v2362 = vpop.f32.mrb[0].mxu0
    %2363 = vmatprep.mubr.bf16.mxu0 0
    %2364 = vmatmul.mubr.bf16.gmra.mrb[0].mxu0 %v2262
    %v2365 = vpop.f32.mrb[0].mxu0
    %v2366 = vadd.f32 %v2266, %v2365
    %v2367 = vpop.f32.mrb[0].mxu0
    %v2368 = vpop.f32.mrb[0].mxu0
    %v2369 = vpop.f32.mrb[0].mxu0
    %2370 = vdwg.mxu0
    %v2371 = vmul.f32 %v2350, 0.01
    %v2372 = vmul.f32 %v2353, 0.01
    %v2373 = vmul.f32 %v2358, 0.01
    %v2374 = vmul.f32 %v2361, 0.01
    %v2375 = vmul.f32 %v2366, 0.01
    %v2376 = vmax.f32 %v2350, %v2371
    %v2377 = vmax.f32 %v2353, %v2372
    %v2378 = vmax.f32 %v2358, %v2373
    %v2379 = vmax.f32 %v2361, %v2374
    %v2380 = vmax.f32 %v2366, %v2375
    %v2381 = vadd.f32 %v2376, %v2377
    %v2382 = vadd.f32 %v2381, %v2378
    %v2383 = vadd.f32 %v2382, %v2379
    %v2384 = vadd.f32 %v2383, %v2380
    %v2385 = vrot.slane %v2384, 4
    %v2386 = vadd.f32 %v2384, %v2385
    %v2387 = vrot.slane %v2386, 2
    %v2388 = vadd.f32 %v2386, %v2387
    %v2389 = vrot.slane %v2388, 1
    %v2390 = vadd.f32 %v2388, %v2389
    %v2391 = vmul.f32 %v2390, 0.025
    %v2392 = vmul.f32 %v2376, %v2376
    %v2393 = vmul.f32 %v2377, %v2377
    %v2394 = vmul.f32 %v2378, %v2378
    %v2395 = vmul.f32 %v2379, %v2379
    %v2396 = vmul.f32 %v2380, %v2380
    %v2397 = vadd.f32 %v2392, %v2393
    %v2398 = vadd.f32 %v2397, %v2394
    %v2399 = vadd.f32 %v2398, %v2395
    %v2400 = vadd.f32 %v2399, %v2396
    %v2401 = vrot.slane %v2400, 4
    %v2402 = vadd.f32 %v2400, %v2401
    %v2403 = vrot.slane %v2402, 2
    %v2404 = vadd.f32 %v2402, %v2403
    %v2405 = vrot.slane %v2404, 1
    %v2406 = vadd.f32 %v2404, %v2405
    %v2407 = vmul.f32 %v2406, 0.025
    %v2408 = vmul.f32 %v2391, %v2391
    %v2409 = vsub.f32 %v2407, %v2408
    %v2410 = vmax.f32 %v2409, 0.0
    %v2411 = vadd.f32 %v2410, 1e-05
    %v2412 = vrsqrt.pop %v2411
    %v2413 = vmul.f32 %v107, %v2412
    %v2414 = vlaneseq
    %v2415 = vshrl.u32 %v2414, 7
    %v2416 = vsub.s32 3, %v2415
    %v2417 = vrot.slane %v2413, %v2416
    %v2418 = vmul.f32 %v2376, %v2417
    %v2419 = vmul.f32 %v2377, %v2417
    %v2420 = vmul.f32 %v2378, %v2417
    %v2421 = vmul.f32 %v2379, %v2417
    %v2422 = vmul.f32 %v2380, %v2417
    %v2423 = vmul.f32 %v2391, %v2413
    %v2425 = vrot.slane %v2423, 7
    %v2427 = vsub.f32 %v107, %v2425
    %v2428 = vlaneseq
    %v2429 = vshrl.u32 %v2428, 7
    %v2430 = vsub.s32 4, %v2429
    %v2431 = vrot.slane %v2427, %v2430
    %v2432 = vadd.f32 %v2418, %v2431
    %v2433 = vadd.f32 %v2419, %v2431
    %v2434 = vadd.f32 %v2420, %v2431
    %v2435 = vadd.f32 %v2421, %v2431
    %v2436 = vadd.f32 %v2422, %v2431
    %v2437 = vpack.c.bf16 %v2433, %v2432
    %v2438 = vpack.c.bf16 %v2435, %v2434
    %v2439 = vpack.c.bf16 %v2436, %v2436
    %v2440 = vlaneseq
    %v2441 = vshrl.u32 %v2440, 7
    %v2442 = vsub.s32 5, %v2441
    %v2443 = vrot.slane %v107, %v2442
    %v2460 = vunpack.c.l.b16 %v1977
    %v2461 = vunpack.c.l.b16 %v1978
    %v2462 = vunpack.c.l.b16 %v1979
    %v2463 = vunpack.c.l.b16 %v1980
    %v2464 = vunpack.c.l.b16 %v1981
    %v2465 = vunpack.c.l.b16 %v1982
    %v2466 = vunpack.c.l.b16 %v1983
    %v2467 = vunpack.c.l.b16 %v1984
    %v2468 = vunpack.c.l.b16 %v1985
    %v2469 = vunpack.c.l.b16 %v1986
    %v2470 = vunpack.c.l.b16 %v1987
    %v2471 = vunpack.c.l.b16 %v1988
    %v2472 = vunpack.c.l.b16 %v1989
    %v2473 = vunpack.c.l.b16 %v1990
    %v2474 = vunpack.c.l.b16 %v1991
    %v2475 = vunpack.c.l.b16 %v1992
    %v2476 = vpack.c.b16 %v2461, %v2460
    %v2477 = vpack.c.b16 %v2463, %v2462
    %v2478 = vpack.c.b16 %v2465, %v2464
    %v2479 = vpack.c.b16 %v2467, %v2466
    %v2480 = vpack.c.b16 %v2469, %v2468
    %v2481 = vpack.c.b16 %v2471, %v2470
    %v2482 = vpack.c.b16 %v2473, %v2472
    %v2483 = vpack.c.b16 %v2475, %v2474
    %2492 = vmatprep.subr.bf16.mxu0 0
    %2493 = vmatpush1.bf16.msra.mxu0 %v2476
    %2494 = vmatprep.subr.bf16.mxu0 0
    %2495 = vmatpush1.bf16.msra.mxu0 %v2477
    %2496 = vmatprep.subr.bf16.mxu0 0
    %2497 = vmatpush1.bf16.msra.mxu0 %v2478
    %2498 = vmatprep.subr.bf16.mxu0 0
    %2499 = vmatpush1.bf16.msra.mxu0 %v2479
    %2500 = vmatprep.subr.bf16.mxu0 0
    %2501 = vmatpush1.bf16.msra.mxu0 %v2480
    %2502 = vmatprep.subr.bf16.mxu0 0
    %2503 = vmatpush1.bf16.msra.mxu0 %v2481
    %2504 = vmatprep.subr.bf16.mxu0 0
    %2505 = vmatpush1.bf16.msra.mxu0 %v2482
    %2506 = vmatprep.subr.bf16.mxu0 0
    %2507 = vmatpush1.bf16.msra.mxu0 %v2483
    %2508 = vmatprep.subr.bf16.mxu0 0
    %2509 = vmatpush1.bf16.msra.mxu0 0
    %2510 = vmatprep.subr.bf16.mxu0 0
    %2511 = vmatpush1.bf16.msra.mxu0 0
    %2512 = vmatprep.subr.bf16.mxu0 0
    %2513 = vmatpush1.bf16.msra.mxu0 0
    %2514 = vmatprep.subr.bf16.mxu0 0
    %2515 = vmatpush1.bf16.msra.mxu0 0
    %2516 = vmatprep.subr.bf16.mxu0 0
    %2517 = vmatpush1.bf16.msra.mxu0 0
    %2518 = vmatprep.subr.bf16.mxu0 0
    %2519 = vmatpush1.bf16.msra.mxu0 0
    %2520 = vmatprep.subr.bf16.mxu0 0
    %2521 = vmatpush1.bf16.msra.mxu0 0
    %2522 = vmatprep.subr.bf16.mxu0 0
    %2523 = vmatpush1.bf16.msra.mxu0 0
    %2524 = vmatprep.mubr.bf16.mxu0 0
    %2525 = vmatmul.mubr.bf16.gmra.mrb[0].mxu0 %v2437
    %v2526 = vpop.f32.mrb[0].mxu0
    %v2527 = vadd.f32 %v2443, %v2526
    %v2528 = vpop.f32.mrb[0].mxu0
    %v2529 = vpop.f32.mrb[0].mxu0
    %v2530 = vadd.f32 %v2443, %v2529
    %v2531 = vpop.f32.mrb[0].mxu0
    %2532 = vmatprep.mubr.bf16.mxu0 0
    %2533 = vmatmul.mubr.bf16.gmra.mrb[0].mxu0 %v2438
    %v2534 = vpop.f32.mrb[0].mxu0
    %v2535 = vadd.f32 %v2443, %v2534
    %v2536 = vpop.f32.mrb[0].mxu0
    %v2537 = vpop.f32.mrb[0].mxu0
    %v2538 = vadd.f32 %v2443, %v2537
    %v2539 = vpop.f32.mrb[0].mxu0
    %2540 = vmatprep.mubr.bf16.mxu0 0
    %2541 = vmatmul.mubr.bf16.gmra.mrb[0].mxu0 %v2439
    %v2542 = vpop.f32.mrb[0].mxu0
    %v2543 = vadd.f32 %v2443, %v2542
    %v2544 = vpop.f32.mrb[0].mxu0
    %v2545 = vpop.f32.mrb[0].mxu0
    %v2546 = vpop.f32.mrb[0].mxu0
    %2547 = vdwg.mxu0
    %2548 = vst [vmem:[#allocation11] sm:$0xff] %v2527
    %2549 = vst [vmem:[#allocation11 + $0x8] sm:$0xff] %v2530
    %2550 = vst [vmem:[#allocation11 + $0x10] sm:$0xff] %v2535
    %2551 = vst [vmem:[#allocation11 + $0x18] sm:$0xff] %v2538
    %2552 = vst [vmem:[#allocation11 + $0x20] sm:$0xff] %v2543
    // Predicated region
    $region66: #{tpu_custom_call.1} parent=1 // pred_check
      _
    $region67: #{tpu_custom_call.1} parent=1 // pred_check_branch
      %2554 = sbr.rel (0) target = $region69
    $region68: #{tpu_custom_call.1} parent=1 // pred_region
      %s2556 = ssub.s32 640, 640
      %2557 = vsyncadd [#allocation4], %s2556
      %s2558 = sshll.u32 [#allocation11], 4
      %s2559 = int_to_ptr.vmem [resolvable:$true] %s2558
      %2564 = dma.vmem_to_hbm [thread:$0]  %s2559, 640, %s11, [#allocation4], 128, 128, 8
    $region69: #{tpu_custom_call.1} parent=1 // pred_fallthru
      _
    // Predicated region
    $region70: #{tpu_custom_call.1} parent=1 // pred_check
      _
    $region71: #{tpu_custom_call.1} parent=1 // pred_check_branch
      %2566 = sbr.rel (0) target = $region73
    $region72: #{tpu_custom_call.1} parent=1 // pred_region
      %2567 = dma.done [#allocation4], 640
    $region73: #{tpu_custom_call.1} parent=1 // pred_fallthru
      _
    %2568 = vsyncpa [#allocation3], 1
    %2569 = vsyncpa [#allocation6], 1
    %2570 = vsyncpa [#allocation9], 1
    %2571 = vsyncpa [#allocation4], 1

</llo_original>
